<compile_context>
chip_gen: v6e
topology: v6e:2x2x1
jax: 0.10.0
libtpu: 0.0.40
codegen_flags: <defaults>
</compile_context>

<pallas_src>
import jax
import jax.numpy as jnp
from jax import lax
from jax.experimental import pallas as pl
from jax.experimental.pallas import tpu as pltpu

LN_EPS = 1e-5       # torch.nn.LayerNorm default eps
LANE = 128
SUBLANE = 8
NSPLIT = 2          # leading parallel grid axis -> both v7x TensorCores


def _round_up(n, m):
    return (n + m - 1) // m * m


def _cdiv(a, b):
    return -(-a // b)


def _vmem_capacity_bytes():
    try:
        info = pltpu.get_tpu_info()
        cap = getattr(info, "vmem_capacity_bytes", None)
        if cap:
            return int(cap)
    except Exception:
        pass
    return 64 * 1024 * 1024      # v7x-safe fallback


# ----------------------------------------------------------------------------
# In-kernel helpers
# ----------------------------------------------------------------------------
def _ln_relu_res_relu(h, gamma, beta, res):
    """relu( relu(LayerNorm(h)*gamma+beta) + res )   (all math in f32)."""
    n = h.shape[-1]
    inv_n = 1.0 / n
    mean = jnp.sum(h, axis=-1, keepdims=True) * inv_n
    var = jnp.sum(h * h, axis=-1, keepdims=True) * inv_n - mean * mean
    var = jnp.maximum(var, 0.0)
    hn = (h - mean) * lax.rsqrt(var + LN_EPS)
    hn = hn * gamma + beta
    act = jnp.maximum(hn, 0.0)
    # TODO(synk): dropout treated as identity (inference / eval semantics).
    return jnp.maximum(act + res, 0.0)


# ----------------------------------------------------------------------------
# Kernel 1: split-K streamed first-layer matmul   x @ [W0 | W0_shortcut]
# ----------------------------------------------------------------------------
def _make_stream_kernel(steps_per_split, tk, x_resident):
    def kernel(x_ref, w_ref, part_ref, acc_ref):
        c = pl.program_id(0)
        k = pl.program_id(1)

        @pl.when(k == 0)
        def _():
            acc_ref[...] = jnp.zeros_like(acc_ref)

        if x_resident:
            start = pl.multiple_of((c * steps_per_split + k) * tk, tk)
            x_tile = x_ref[:, pl.ds(start, tk)]
        else:
            x_tile = x_ref[...]
        acc_ref[...] += jnp.dot(x_tile, w_ref[...],
                                preferred_element_type=jnp.float32)

        @pl.when(k == steps_per_split - 1)
        def _():
            part_ref[...] = acc_ref[...]

    return kernel


# ----------------------------------------------------------------------------
# Kernel 2: combine the split-K partials + resident tail (later blocks, fc_out)
# ----------------------------------------------------------------------------
def _make_epilogue_kernel(num_blocks, proj_flags, dims, nsplit):
    d0 = dims[0]

    def kernel(*refs):
        part_ref = refs[0]
        b0_ref, g0_ref, bt0_ref = refs[1:4]
        pos = 4
        later = []
        for _ in range(num_blocks - 1):
            later.append(refs[pos:pos + 4])
            pos += 4
        wout_ref, bout_ref = refs[pos], refs[pos + 1]
        o_ref = refs[pos + 2]

        acc = part_ref[0]
        for s in range(1, nsplit):
            acc = acc + part_ref[s]

        hf = acc + b0_ref[...]
        a = _ln_relu_res_relu(hf[:, :d0], g0_ref[...], bt0_ref[...], hf[:, d0:])

        for (w_ref, b_ref, g_ref, bt_ref), proj, d in zip(
                later, proj_flags[1:], dims[1:]):
            hf = jnp.dot(a.astype(jnp.bfloat16), w_ref[...],
                         preferred_element_type=jnp.float32) + b_ref[...]
            if proj:
                h, res = hf[:, :d], hf[:, d:]
            else:            # Identity shortcut: residual is the block input
                h, res = hf, a
            a = _ln_relu_res_relu(h, g_ref[...], bt_ref[...], res)

        # TODO(synk): final dropout treated as identity.
        o_ref[...] = jnp.dot(a.astype(jnp.bfloat16), wout_ref[...],
                             preferred_element_type=jnp.float32) + bout_ref[...]

    return kernel


# ----------------------------------------------------------------------------
# Wrapper: pack params, build the two pallas_calls, return a jitted forward
# ----------------------------------------------------------------------------
def build_fused_forward(block_params, w_out, b_out, input_dim, batch, tk=None):
    dims = [int(p["w"].shape[1]) for p in block_params]
    proj_flags = [("ws" in p) for p in block_params]
    num_blocks = len(block_params)
    # TODO(synk): the fused path requires block 0 to have a Linear shortcut;
    # MLPtrain always satisfies this (input_dim = 80*1280 != hidden_dims[0]).
    assert proj_flags[0], "block 0 must have a projection shortcut"

    d0 = dims[0]
    N0 = 2 * d0
    d_last = dims[-1]

    B_pad = _round_up(max(batch, 1), SUBLANE)
    vmem_cap = _vmem_capacity_bytes()

    k_per_split = max(LANE, _round_up(_cdiv(input_dim, NSPLIT), LANE))
    x_res_bytes = B_pad * _round_up(input_dim, LANE) * 2

    # K-tile: largest tile whose double-buffered streamed footprint fits a
    # generation-aware budget; prefer tiles that divide the per-core K exactly
    # (avoids streaming zero-padded weight rows).
    if tk is None:
        budget = int(vmem_cap * 0.6)
        fits = [c for c in (4096, 2048, 1024, 512, 256, 128)
                if 2 * c * N0 * 2 + x_res_bytes + 4 * 2**20 <= budget
                and c <= k_per_split]
        if not fits:
            fits = [128]
        exact = [c for c in fits if k_per_split % c == 0]
        tk = exact[0] if exact else fits[0]
    assert tk % LANE == 0

    k_split_pad = _round_up(k_per_split, tk)
    steps_per_split = k_split_pad // tk
    K_pad = NSPLIT * k_split_pad

    # Keep x fully resident in VMEM when small (removes per-step 8-row DMAs).
    x_resident = x_res_bytes <= 4 * 2**20

    # --- pack parameter operands (once, outside the hot path) ---------------
    p0 = block_params[0]
    w0 = jnp.concatenate([p0["w"], p0["ws"]], axis=1)
    w0 = jnp.pad(w0, ((0, K_pad - input_dim), (0, 0))).astype(jnp.bfloat16)
    b0 = jnp.concatenate([p0["b"], p0["bs"]], axis=1).astype(jnp.float32)

    tail_ops = [b0, p0["gamma"].astype(jnp.float32), p0["beta"].astype(jnp.float32)]
    tail_specs = [pl.BlockSpec((1, N0), lambda i: (0, 0)),
                  pl.BlockSpec((1, d0), lambda i: (0, 0)),
                  pl.BlockSpec((1, d0), lambda i: (0, 0))]

    for p, d in zip(block_params[1:], dims[1:]):
        if "ws" in p:
            w = jnp.concatenate([p["w"], p["ws"]], axis=1)
            b = jnp.concatenate([p["b"], p["bs"]], axis=1)
        else:
            w, b = p["w"], p["b"]
        d_in, n_i = int(w.shape[0]), int(w.shape[1])
        tail_ops += [w.astype(jnp.bfloat16), b.astype(jnp.float32),
                     p["gamma"].astype(jnp.float32), p["beta"].astype(jnp.float32)]
        tail_specs += [pl.BlockSpec((d_in, n_i), lambda i: (0, 0)),
                       pl.BlockSpec((1, n_i), lambda i: (0, 0)),
                       pl.BlockSpec((1, d), lambda i: (0, 0)),
                       pl.BlockSpec((1, d), lambda i: (0, 0))]

    # fc_out zero-padded to 128 lanes -> lane-dense final store
    wo = jnp.pad(w_out, ((0, 0), (0, LANE - w_out.shape[1]))).astype(jnp.bfloat16)
    bo = jnp.pad(b_out, ((0, 0), (0, LANE - b_out.shape[1]))).astype(jnp.float32)
    tail_ops += [wo, bo]
    tail_specs += [pl.BlockSpec((d_last, LANE), lambda i: (0, 0)),
                   pl.BlockSpec((1, LANE), lambda i: (0, 0))]

    # --- kernel 1: streamed split-K first-layer matmul -----------------------
    if x_resident:
        x_spec = pl.BlockSpec((B_pad, K_pad), lambda c, k: (0, 0))
    else:
        x_spec = pl.BlockSpec((B_pad, tk),
                              lambda c, k: (0, c * steps_per_split + k))
    w0_spec = pl.BlockSpec((tk, N0), lambda c, k: (c * steps_per_split + k, 0))

    stream_needed = (2 * tk * N0 * 2
                     + 2 * B_pad * (K_pad if x_resident else tk) * 2
                     + 3 * B_pad * N0 * 4)
    vmem_limit = int(min(max(32 * 2**20, stream_needed + 8 * 2**20),
                         int(vmem_cap * 0.85)))

    stream_flops = 2 * B_pad * K_pad * N0
    stream_bytes = int(K_pad * N0 * 2 + B_pad * K_pad * 2 + NSPLIT * B_pad * N0 * 4)

    stream_call = pl.pallas_call(
        _make_stream_kernel(steps_per_split, tk, x_resident),
        out_shape=jax.ShapeDtypeStruct((NSPLIT, B_pad, N0), jnp.float32),
        grid_spec=pltpu.PrefetchScalarGridSpec(
            num_scalar_prefetch=0,
            grid=(NSPLIT, steps_per_split),
            in_specs=[x_spec, w0_spec],
            out_specs=pl.BlockSpec((None, B_pad, N0), lambda c, k: (c, 0, 0)),
            scratch_shapes=[pltpu.VMEM((B_pad, N0), jnp.float32)],
        ),
        compiler_params=pltpu.CompilerParams(
            dimension_semantics=("parallel", "arbitrary"),  # split-K || , K reduction
            vmem_limit_bytes=vmem_limit,
        ),
        cost_estimate=pl.CostEstimate(flops=int(stream_flops), transcendentals=0,
                                      bytes_accessed=stream_bytes),
    )

    # --- kernel 2: combine partials + resident tail ---------------------------
    epi_call = pl.pallas_call(
        _make_epilogue_kernel(num_blocks, proj_flags, dims, NSPLIT),
        out_shape=jax.ShapeDtypeStruct((B_pad, LANE), jnp.float32),
        grid=(1,),
        in_specs=[pl.BlockSpec((NSPLIT, B_pad, N0), lambda i: (0, 0, 0))] + tail_specs,
        out_specs=pl.BlockSpec((B_pad, LANE), lambda i: (0, 0)),
        compiler_params=pltpu.CompilerParams(
            dimension_semantics=("arbitrary",),
            vmem_limit_bytes=32 * 2**20,
        ),
    )

    @jax.jit
    def forward(x):
        B = x.shape[0]
        xb = x.reshape(B, -1).astype(jnp.bfloat16)       # cast first: pad copies 2B data
        xb = jnp.pad(xb, ((0, B_pad - B), (0, K_pad - input_dim)))
        partials = stream_call(xb, w0)
        out = epi_call(partials, *tail_ops)
        return out[:B, :1]

    return forward


# ----------------------------------------------------------------------------
# Deterministic parameter construction (Kaiming normal, fan_in, relu)
# ----------------------------------------------------------------------------
def _kaiming(key, fan_in, fan_out):
    std = (2.0 / fan_in) ** 0.5
    # stored as [in_features, out_features] so the kernel computes x @ W
    return jax.random.normal(key, (fan_in, fan_out), jnp.float32) * std


def make_params(key, input_dim, hidden_dims):
    params = []
    prev = input_dim
    for dim in hidden_dims:
        key, k1, k2 = jax.random.split(key, 3)
        p = {
            "w": _kaiming(k1, prev, dim),
            "b": jnp.zeros((1, dim), jnp.float32),
            "gamma": jnp.ones((1, dim), jnp.float32),
            "beta": jnp.zeros((1, dim), jnp.float32),
        }
        if prev != dim:                       # Linear shortcut, else Identity
            p["ws"] = _kaiming(k2, prev, dim)
            p["bs"] = jnp.zeros((1, dim), jnp.float32)
        params.append(p)
        prev = dim
    key, kout = jax.random.split(key)
    w_out = _kaiming(kout, prev, 1)
    b_out = jnp.zeros((1, 1), jnp.float32)
    return params, w_out, b_out


# ----------------------------------------------------------------------------
# Pure-JAX f32 reference (eval semantics: dropout = identity)
# ----------------------------------------------------------------------------
def _reference_forward(x, block_params, w_out, b_out):
    h = x.reshape(x.shape[0], -1).astype(jnp.float32)
    for p in block_params:
        res = h @ p["ws"] + p["bs"] if "ws" in p else h
        z = h @ p["w"] + p["b"]
        mu = jnp.mean(z, axis=-1, keepdims=True)
        var = jnp.mean((z - mu) ** 2, axis=-1, keepdims=True)
        zn = (z - mu) / jnp.sqrt(var + LN_EPS) * p["gamma"] + p["beta"]
        h = jnp.maximum(jnp.maximum(zn, 0.0) + res, 0.0)
    return h @ w_out + b_out


# ----------------------------------------------------------------------------
if __name__ == "__main__":
    # Small shapes consistent with the module (real: [B, 80, 1280] -> 102400
    # features, hidden [1024, 512, 256]); scaled down here. hidden_dims chosen
    # so the stack exercises both Linear and Identity shortcuts.
    B, S, F = 2, 8, 64                 # flattened input dim K = 512
    hidden_dims = [256, 128, 128]      # proj, proj, identity

    key = jax.random.PRNGKey(0)
    key, kx = jax.random.split(key)
    x = jax.random.normal(kx, (B, S, F), jnp.float32)

    block_params, w_out, b_out = make_params(key, S * F, hidden_dims)

    # tk=128 at this toy K exercises the multi-step K accumulation on both
    # split halves; at real scale tk is auto-derived (2048 -> 25 steps/core).
    forward = build_fused_forward(block_params, w_out, b_out,
                                  input_dim=S * F, batch=B, tk=128)

    out = jax.block_until_ready(forward(x))
    assert out.shape == (B, 1), out.shape
    assert bool(jnp.all(jnp.isfinite(out)))

    # Loose tolerance: kernel uses bf16 weights/activations on the MXU passes.
    ref = _reference_forward(x, block_params, w_out, b_out)
    err = float(jnp.max(jnp.abs(out - ref)))
    scale = float(jnp.max(jnp.abs(ref))) + 1e-6
    assert err <= 0.05 * scale + 0.05, (err, scale)

    print("KERNEL_OK")
</pallas_src>

<mosaic_0001>
module attributes {stable_mosaic.version = 11 : i64} {
  func.func @kernel(%arg0: i32, %arg1: i32, %arg2: memref<8x512xbf16, #tpu.memory_space<vmem>>, %arg3: memref<128x512xbf16, #tpu.memory_space<vmem>>, %arg4: memref<1x8x512xf32, #tpu.memory_space<vmem>>, %arg5: memref<8x512xf32, #tpu.memory_space<vmem>>) attributes {dimension_semantics = [#tpu.dimension_semantics<parallel>, #tpu.dimension_semantics<arbitrary>], iteration_bounds = array<i64: 2, 2>, scalar_prefetch = 0 : i64, scratch_operands = 1 : i64, tpu.core_type = #tpu.core_type<tc>, window_params = [{pipeline_mode = #tpu.pipeline_mode<synchronous>, transform_indices = @transform_0, window_bounds = array<i64: 8, 512>}, {transform_indices = @transform_1, window_bounds = array<i64: 128, 512>}, {transform_indices = @transform_2, window_bounds = array<i64: 1, 8, 512>}]} {
    %c0_i32 = arith.constant 0 : i32
    %0 = arith.cmpi eq, %arg1, %c0_i32 : i32
    %1 = arith.extui %0 : i1 to i32
    %c0_i32_0 = arith.constant 0 : i32
    %2 = arith.cmpi ne, %1, %c0_i32_0 : i32
    scf.if %2 {
      %cst_8 = arith.constant 0.000000e+00 : f32
      %17 = vector.broadcast %cst_8 : f32 to vector<8x512xf32>
      %c0_9 = arith.constant 0 : index
      %c0_10 = arith.constant 0 : index
      %18 = vector.load %arg5[%c0_9, %c0_10] : memref<8x512xf32, #tpu.memory_space<vmem>>, vector<8x512xf32>
      tpu.vector_store %arg5[%c0_9, %c0_10], %17 {strides = array<i32>} : memref<8x512xf32, #tpu.memory_space<vmem>>, vector<8x512xf32>,
    } else {
    }
    %c2_i32 = arith.constant 2 : i32
    %3 = arith.muli %arg0, %c2_i32 : i32
    %4 = arith.addi %3, %arg1 : i32
    %c128_i32 = arith.constant 128 : i32
    %5 = arith.muli %4, %c128_i32 : i32
    %6 = tpu.assume_multiple %5, 128 : i32
    %c0 = arith.constant 0 : index
    %7 = arith.index_cast %6 : i32 to index
    %8 = vector.load %arg2[%c0, %7] : memref<8x512xbf16, #tpu.memory_space<vmem>>, vector<8x128xbf16>
    %c0_1 = arith.constant 0 : index
    %c0_2 = arith.constant 0 : index
    %9 = vector.load %arg5[%c0_1, %c0_2] : memref<8x512xf32, #tpu.memory_space<vmem>>, vector<8x512xf32>
    %c0_3 = arith.constant 0 : index
    %c0_4 = arith.constant 0 : index
    %10 = vector.load %arg3[%c0_3, %c0_4] : memref<128x512xbf16, #tpu.memory_space<vmem>>, vector<128x512xbf16>
    %cst = arith.constant dense<0.000000e+00> : vector<8x512xf32>
    %11 = tpu.matmul %8, %10, %cst {dimension_numbers = #tpu.dot_dimension_numbers<[1], [0], [0], [1], [0, 0, 1, 1], [], []>} : vector<8x128xbf16>, vector<128x512xbf16>, vector<8x512xf32> -> vector<8x512xf32>
    %12 = arith.addf %9, %11 : vector<8x512xf32>
    %c0_5 = arith.constant 0 : index
    %c0_6 = arith.constant 0 : index
    %13 = vector.load %arg5[%c0_5, %c0_6] : memref<8x512xf32, #tpu.memory_space<vmem>>, vector<8x512xf32>
    tpu.vector_store %arg5[%c0_5, %c0_6], %12 {strides = array<i32>} : memref<8x512xf32, #tpu.memory_space<vmem>>, vector<8x512xf32>,
    %c1_i32 = arith.constant 1 : i32
    %14 = arith.cmpi eq, %arg1, %c1_i32 : i32
    %15 = arith.extui %14 : i1 to i32
    %c0_i32_7 = arith.constant 0 : i32
    %16 = arith.cmpi ne, %15, %c0_i32_7 : i32
    scf.if %16 {
      %c0_8 = arith.constant 0 : index
      %c0_9 = arith.constant 0 : index
      %17 = vector.load %arg5[%c0_8, %c0_9] : memref<8x512xf32, #tpu.memory_space<vmem>>, vector<8x512xf32>
      %c0_10 = arith.constant 0 : index
      %c0_11 = arith.constant 0 : index
      %c0_12 = arith.constant 0 : index
      %18 = vector.load %arg4[%c0_10, %c0_11, %c0_12] : memref<1x8x512xf32, #tpu.memory_space<vmem>>, vector<1x8x512xf32>
      %19 = vector.shape_cast %18 : vector<1x8x512xf32> to vector<8x512xf32>
      %20 = vector.shape_cast %17 : vector<8x512xf32> to vector<1x8x512xf32>
      tpu.vector_store %arg4[%c0_10, %c0_11, %c0_12], %20 {strides = array<i32>} : memref<1x8x512xf32, #tpu.memory_space<vmem>>, vector<1x8x512xf32>,
    } else {
    }
    return
  }
  func.func @transform_0(%arg0: i32, %arg1: i32) -> (i32, i32) {
    %c0_i32 = arith.constant 0 : i32
    %c0_i32_0 = arith.constant 0 : i32
    %c0_i32_1 = arith.constant 0 : i32
    return %c0_i32, %c0_i32_0 : i32, i32
  }
  func.func @transform_1(%arg0: i32, %arg1: i32) -> (i32, i32) {
    %c2_i32 = arith.constant 2 : i32
    %0 = arith.muli %arg0, %c2_i32 : i32
    %1 = arith.addi %0, %arg1 : i32
    %c0_i32 = arith.constant 0 : i32
    %c0_i32_0 = arith.constant 0 : i32
    return %1, %c0_i32 : i32, i32
  }
  func.func @transform_2(%arg0: i32, %arg1: i32) -> (i32, i32, i32) {
    %c0_i32 = arith.constant 0 : i32
    %c0_i32_0 = arith.constant 0 : i32
    %c0_i32_1 = arith.constant 0 : i32
    return %arg0, %c0_i32, %c0_i32_0 : i32, i32, i32
  }
}

module attributes {stable_mosaic.version = 11 : i64} {
  func.func @kernel(%arg0: i32, %arg1: memref<2x8x512xf32, #tpu.memory_space<vmem>>, %arg2: memref<1x512xf32, #tpu.memory_space<vmem>>, %arg3: memref<1x256xf32, #tpu.memory_space<vmem>>, %arg4: memref<1x256xf32, #tpu.memory_space<vmem>>, %arg5: memref<256x256xbf16, #tpu.memory_space<vmem>>, %arg6: memref<1x256xf32, #tpu.memory_space<vmem>>, %arg7: memref<1x128xf32, #tpu.memory_space<vmem>>, %arg8: memref<1x128xf32, #tpu.memory_space<vmem>>, %arg9: memref<128x128xbf16, #tpu.memory_space<vmem>>, %arg10: memref<1x128xf32, #tpu.memory_space<vmem>>, %arg11: memref<1x128xf32, #tpu.memory_space<vmem>>, %arg12: memref<1x128xf32, #tpu.memory_space<vmem>>, %arg13: memref<128x128xbf16, #tpu.memory_space<vmem>>, %arg14: memref<1x128xf32, #tpu.memory_space<vmem>>, %arg15: memref<8x128xf32, #tpu.memory_space<vmem>>) attributes {dimension_semantics = [#tpu.dimension_semantics<arbitrary>], iteration_bounds = array<i64: 1>, scalar_prefetch = 0 : i64, scratch_operands = 0 : i64, tpu.core_type = #tpu.core_type<tc>, window_params = [{pipeline_mode = #tpu.pipeline_mode<synchronous>, transform_indices = @transform_0, window_bounds = array<i64: 2, 8, 512>}, {pipeline_mode = #tpu.pipeline_mode<synchronous>, transform_indices = @transform_1, window_bounds = array<i64: 1, 512>}, {pipeline_mode = #tpu.pipeline_mode<synchronous>, transform_indices = @transform_2, window_bounds = array<i64: 1, 256>}, {pipeline_mode = #tpu.pipeline_mode<synchronous>, transform_indices = @transform_3, window_bounds = array<i64: 1, 256>}, {pipeline_mode = #tpu.pipeline_mode<synchronous>, transform_indices = @transform_4, window_bounds = array<i64: 256, 256>}, {pipeline_mode = #tpu.pipeline_mode<synchronous>, transform_indices = @transform_5, window_bounds = array<i64: 1, 256>}, {pipeline_mode = #tpu.pipeline_mode<synchronous>, transform_indices = @transform_6, window_bounds = array<i64: 1, 128>}, {pipeline_mode = #tpu.pipeline_mode<synchronous>, transform_indices = @transform_7, window_bounds = array<i64: 1, 128>}, {pipeline_mode = #tpu.pipeline_mode<synchronous>, transform_indices = @transform_8, window_bounds = array<i64: 128, 128>}, {pipeline_mode = #tpu.pipeline_mode<synchronous>, transform_indices = @transform_9, window_bounds = array<i64: 1, 128>}, {pipeline_mode = #tpu.pipeline_mode<synchronous>, transform_indices = @transform_10, window_bounds = array<i64: 1, 128>}, {pipeline_mode = #tpu.pipeline_mode<synchronous>, transform_indices = @transform_11, window_bounds = array<i64: 1, 128>}, {pipeline_mode = #tpu.pipeline_mode<synchronous>, transform_indices = @transform_12, window_bounds = array<i64: 128, 128>}, {pipeline_mode = #tpu.pipeline_mode<synchronous>, transform_indices = @transform_13, window_bounds = array<i64: 1, 128>}, {pipeline_mode = #tpu.pipeline_mode<synchronous>, transform_indices = @transform_14, window_bounds = array<i64: 8, 128>}]} {
    %c0 = arith.constant 0 : index
    %c0_0 = arith.constant 0 : index
    %c0_1 = arith.constant 0 : index
    %0 = vector.load %arg1[%c0, %c0_0, %c0_1] : memref<2x8x512xf32, #tpu.memory_space<vmem>>, vector<1x8x512xf32>
    %1 = vector.shape_cast %0 : vector<1x8x512xf32> to vector<8x512xf32>
    %c1 = arith.constant 1 : index
    %c0_2 = arith.constant 0 : index
    %c0_3 = arith.constant 0 : index
    %2 = vector.load %arg1[%c1, %c0_2, %c0_3] : memref<2x8x512xf32, #tpu.memory_space<vmem>>, vector<1x8x512xf32>
    %3 = vector.shape_cast %2 : vector<1x8x512xf32> to vector<8x512xf32>
    %4 = arith.addf %1, %3 : vector<8x512xf32>
    %c0_4 = arith.constant 0 : index
    %c0_5 = arith.constant 0 : index
    %5 = vector.load %arg2[%c0_4, %c0_5] : memref<1x512xf32, #tpu.memory_space<vmem>>, vector<1x512xf32>
    %6 = vector.broadcast %5 : vector<1x512xf32> to vector<8x512xf32>
    %7 = arith.addf %4, %6 : vector<8x512xf32>
    %8 = vector.extract_strided_slice %7 {offsets = [0, 0], sizes = [8, 256], strides = [1, 1]} : vector<8x512xf32> to vector<8x256xf32>
    %c0_6 = arith.constant 0 : index
    %c0_7 = arith.constant 0 : index
    %9 = vector.load %arg3[%c0_6, %c0_7] : memref<1x256xf32, #tpu.memory_space<vmem>>, vector<1x256xf32>
    %c0_8 = arith.constant 0 : index
    %c0_9 = arith.constant 0 : index
    %10 = vector.load %arg4[%c0_8, %c0_9] : memref<1x256xf32, #tpu.memory_space<vmem>>, vector<1x256xf32>
    %11 = vector.extract_strided_slice %7 {offsets = [0, 256], sizes = [8, 256], strides = [1, 1]} : vector<8x512xf32> to vector<8x256xf32>
    %cst = arith.constant dense<0.000000e+00> : vector<8xf32>
    %12 = vector.multi_reduction <add>, %8, %cst [1] : vector<8x256xf32> to vector<8xf32>
    %13 = vector.shape_cast %12 : vector<8xf32> to vector<8x1xf32>
    %cst_10 = arith.constant 3.906250e-03 : f32
    %14 = vector.broadcast %cst_10 : f32 to vector<8x1xf32>
    %15 = arith.mulf %13, %14 : vector<8x1xf32>
    %16 = arith.mulf %8, %8 : vector<8x256xf32>
    %cst_11 = arith.constant dense<0.000000e+00> : vector<8xf32>
    %17 = vector.multi_reduction <add>, %16, %cst_11 [1] : vector<8x256xf32> to vector<8xf32>
    %18 = vector.shape_cast %17 : vector<8xf32> to vector<8x1xf32>
    %cst_12 = arith.constant 3.906250e-03 : f32
    %19 = vector.broadcast %cst_12 : f32 to vector<8x1xf32>
    %20 = arith.mulf %18, %19 : vector<8x1xf32>
    %21 = arith.mulf %15, %15 : vector<8x1xf32>
    %22 = arith.subf %20, %21 : vector<8x1xf32>
    %cst_13 = arith.constant 0.000000e+00 : f32
    %23 = vector.broadcast %cst_13 : f32 to vector<8x1xf32>
    %24 = arith.maximumf %22, %23 : vector<8x1xf32>
    %25 = vector.broadcast %15 : vector<8x1xf32> to vector<8x256xf32>
    %26 = arith.subf %8, %25 : vector<8x256xf32>
    %cst_14 = arith.constant 9.99999974E-6 : f32
    %27 = vector.broadcast %cst_14 : f32 to vector<8x1xf32>
    %28 = arith.addf %24, %27 : vector<8x1xf32>
    %29 = math.rsqrt %28 : vector<8x1xf32>
    %30 = vector.broadcast %29 : vector<8x1xf32> to vector<8x256xf32>
    %31 = arith.mulf %26, %30 : vector<8x256xf32>
    %32 = vector.broadcast %9 : vector<1x256xf32> to vector<8x256xf32>
    %33 = arith.mulf %31, %32 : vector<8x256xf32>
    %34 = vector.broadcast %10 : vector<1x256xf32> to vector<8x256xf32>
    %35 = arith.addf %33, %34 : vector<8x256xf32>
    %cst_15 = arith.constant 0.000000e+00 : f32
    %36 = vector.broadcast %cst_15 : f32 to vector<8x256xf32>
    %37 = arith.maximumf %35, %36 : vector<8x256xf32>
    %38 = arith.addf %37, %11 : vector<8x256xf32>
    %cst_16 = arith.constant 0.000000e+00 : f32
    %39 = vector.broadcast %cst_16 : f32 to vector<8x256xf32>
    %40 = arith.maximumf %38, %39 : vector<8x256xf32>
    %41 = arith.truncf %40 : vector<8x256xf32> to vector<8x256xbf16>
    %c0_17 = arith.constant 0 : index
    %c0_18 = arith.constant 0 : index
    %42 = vector.load %arg5[%c0_17, %c0_18] : memref<256x256xbf16, #tpu.memory_space<vmem>>, vector<256x256xbf16>
    %cst_19 = arith.constant dense<0.000000e+00> : vector<8x256xf32>
    %43 = tpu.matmul %41, %42, %cst_19 {dimension_numbers = #tpu.dot_dimension_numbers<[1], [0], [0], [1], [0, 0, 1, 1], [], []>} : vector<8x256xbf16>, vector<256x256xbf16>, vector<8x256xf32> -> vector<8x256xf32>
    %c0_20 = arith.constant 0 : index
    %c0_21 = arith.constant 0 : index
    %44 = vector.load %arg6[%c0_20, %c0_21] : memref<1x256xf32, #tpu.memory_space<vmem>>, vector<1x256xf32>
    %45 = vector.broadcast %44 : vector<1x256xf32> to vector<8x256xf32>
    %46 = arith.addf %43, %45 : vector<8x256xf32>
    %47 = vector.extract_strided_slice %46 {offsets = [0, 0], sizes = [8, 128], strides = [1, 1]} : vector<8x256xf32> to vector<8x128xf32>
    %48 = vector.extract_strided_slice %46 {offsets = [0, 128], sizes = [8, 128], strides = [1, 1]} : vector<8x256xf32> to vector<8x128xf32>
    %c0_22 = arith.constant 0 : index
    %c0_23 = arith.constant 0 : index
    %49 = vector.load %arg7[%c0_22, %c0_23] : memref<1x128xf32, #tpu.memory_space<vmem>>, vector<1x128xf32>
    %c0_24 = arith.constant 0 : index
    %c0_25 = arith.constant 0 : index
    %50 = vector.load %arg8[%c0_24, %c0_25] : memref<1x128xf32, #tpu.memory_space<vmem>>, vector<1x128xf32>
    %cst_26 = arith.constant dense<0.000000e+00> : vector<8xf32>
    %51 = vector.multi_reduction <add>, %47, %cst_26 [1] : vector<8x128xf32> to vector<8xf32>
    %52 = vector.shape_cast %51 : vector<8xf32> to vector<8x1xf32>
    %cst_27 = arith.constant 7.812500e-03 : f32
    %53 = vector.broadcast %cst_27 : f32 to vector<8x1xf32>
    %54 = arith.mulf %52, %53 : vector<8x1xf32>
    %55 = arith.mulf %47, %47 : vector<8x128xf32>
    %cst_28 = arith.constant dense<0.000000e+00> : vector<8xf32>
    %56 = vector.multi_reduction <add>, %55, %cst_28 [1] : vector<8x128xf32> to vector<8xf32>
    %57 = vector.shape_cast %56 : vector<8xf32> to vector<8x1xf32>
    %cst_29 = arith.constant 7.812500e-03 : f32
    %58 = vector.broadcast %cst_29 : f32 to vector<8x1xf32>
    %59 = arith.mulf %57, %58 : vector<8x1xf32>
    %60 = arith.mulf %54, %54 : vector<8x1xf32>
    %61 = arith.subf %59, %60 : vector<8x1xf32>
    %cst_30 = arith.constant 0.000000e+00 : f32
    %62 = vector.broadcast %cst_30 : f32 to vector<8x1xf32>
    %63 = arith.maximumf %61, %62 : vector<8x1xf32>
    %64 = vector.broadcast %54 : vector<8x1xf32> to vector<8x128xf32>
    %65 = arith.subf %47, %64 : vector<8x128xf32>
    %cst_31 = arith.constant 9.99999974E-6 : f32
    %66 = vector.broadcast %cst_31 : f32 to vector<8x1xf32>
    %67 = arith.addf %63, %66 : vector<8x1xf32>
    %68 = math.rsqrt %67 : vector<8x1xf32>
    %69 = vector.broadcast %68 : vector<8x1xf32> to vector<8x128xf32>
    %70 = arith.mulf %65, %69 : vector<8x128xf32>
    %71 = vector.broadcast %49 : vector<1x128xf32> to vector<8x128xf32>
    %72 = arith.mulf %70, %71 : vector<8x128xf32>
    %73 = vector.broadcast %50 : vector<1x128xf32> to vector<8x128xf32>
    %74 = arith.addf %72, %73 : vector<8x128xf32>
    %cst_32 = arith.constant 0.000000e+00 : f32
    %75 = vector.broadcast %cst_32 : f32 to vector<8x128xf32>
    %76 = arith.maximumf %74, %75 : vector<8x128xf32>
    %77 = arith.addf %76, %48 : vector<8x128xf32>
    %cst_33 = arith.constant 0.000000e+00 : f32
    %78 = vector.broadcast %cst_33 : f32 to vector<8x128xf32>
    %79 = arith.maximumf %77, %78 : vector<8x128xf32>
    %80 = arith.truncf %79 : vector<8x128xf32> to vector<8x128xbf16>
    %c0_34 = arith.constant 0 : index
    %c0_35 = arith.constant 0 : index
    %81 = vector.load %arg9[%c0_34, %c0_35] : memref<128x128xbf16, #tpu.memory_space<vmem>>, vector<128x128xbf16>
    %cst_36 = arith.constant dense<0.000000e+00> : vector<8x128xf32>
    %82 = tpu.matmul %80, %81, %cst_36 {dimension_numbers = #tpu.dot_dimension_numbers<[1], [0], [0], [1], [0, 0, 1, 1], [], []>} : vector<8x128xbf16>, vector<128x128xbf16>, vector<8x128xf32> -> vector<8x128xf32>
    %c0_37 = arith.constant 0 : index
    %c0_38 = arith.constant 0 : index
    %83 = vector.load %arg10[%c0_37, %c0_38] : memref<1x128xf32, #tpu.memory_space<vmem>>, vector<1x128xf32>
    %84 = vector.broadcast %83 : vector<1x128xf32> to vector<8x128xf32>
    %85 = arith.addf %82, %84 : vector<8x128xf32>
    %c0_39 = arith.constant 0 : index
    %c0_40 = arith.constant 0 : index
    %86 = vector.load %arg11[%c0_39, %c0_40] : memref<1x128xf32, #tpu.memory_space<vmem>>, vector<1x128xf32>
    %c0_41 = arith.constant 0 : index
    %c0_42 = arith.constant 0 : index
    %87 = vector.load %arg12[%c0_41, %c0_42] : memref<1x128xf32, #tpu.memory_space<vmem>>, vector<1x128xf32>
    %cst_43 = arith.constant dense<0.000000e+00> : vector<8xf32>
    %88 = vector.multi_reduction <add>, %85, %cst_43 [1] : vector<8x128xf32> to vector<8xf32>
    %89 = vector.shape_cast %88 : vector<8xf32> to vector<8x1xf32>
    %cst_44 = arith.constant 7.812500e-03 : f32
    %90 = vector.broadcast %cst_44 : f32 to vector<8x1xf32>
    %91 = arith.mulf %89, %90 : vector<8x1xf32>
    %92 = arith.mulf %85, %85 : vector<8x128xf32>
    %cst_45 = arith.constant dense<0.000000e+00> : vector<8xf32>
    %93 = vector.multi_reduction <add>, %92, %cst_45 [1] : vector<8x128xf32> to vector<8xf32>
    %94 = vector.shape_cast %93 : vector<8xf32> to vector<8x1xf32>
    %cst_46 = arith.constant 7.812500e-03 : f32
    %95 = vector.broadcast %cst_46 : f32 to vector<8x1xf32>
    %96 = arith.mulf %94, %95 : vector<8x1xf32>
    %97 = arith.mulf %91, %91 : vector<8x1xf32>
    %98 = arith.subf %96, %97 : vector<8x1xf32>
    %cst_47 = arith.constant 0.000000e+00 : f32
    %99 = vector.broadcast %cst_47 : f32 to vector<8x1xf32>
    %100 = arith.maximumf %98, %99 : vector<8x1xf32>
    %101 = vector.broadcast %91 : vector<8x1xf32> to vector<8x128xf32>
    %102 = arith.subf %85, %101 : vector<8x128xf32>
    %cst_48 = arith.constant 9.99999974E-6 : f32
    %103 = vector.broadcast %cst_48 : f32 to vector<8x1xf32>
    %104 = arith.addf %100, %103 : vector<8x1xf32>
    %105 = math.rsqrt %104 : vector<8x1xf32>
    %106 = vector.broadcast %105 : vector<8x1xf32> to vector<8x128xf32>
    %107 = arith.mulf %102, %106 : vector<8x128xf32>
    %108 = vector.broadcast %86 : vector<1x128xf32> to vector<8x128xf32>
    %109 = arith.mulf %107, %108 : vector<8x128xf32>
    %110 = vector.broadcast %87 : vector<1x128xf32> to vector<8x128xf32>
    %111 = arith.addf %109, %110 : vector<8x128xf32>
    %cst_49 = arith.constant 0.000000e+00 : f32
    %112 = vector.broadcast %cst_49 : f32 to vector<8x128xf32>
    %113 = arith.maximumf %111, %112 : vector<8x128xf32>
    %114 = arith.addf %113, %79 : vector<8x128xf32>
    %cst_50 = arith.constant 0.000000e+00 : f32
    %115 = vector.broadcast %cst_50 : f32 to vector<8x128xf32>
    %116 = arith.maximumf %114, %115 : vector<8x128xf32>
    %117 = arith.truncf %116 : vector<8x128xf32> to vector<8x128xbf16>
    %c0_51 = arith.constant 0 : index
    %c0_52 = arith.constant 0 : index
    %118 = vector.load %arg13[%c0_51, %c0_52] : memref<128x128xbf16, #tpu.memory_space<vmem>>, vector<128x128xbf16>
    %cst_53 = arith.constant dense<0.000000e+00> : vector<8x128xf32>
    %119 = tpu.matmul %117, %118, %cst_53 {dimension_numbers = #tpu.dot_dimension_numbers<[1], [0], [0], [1], [0, 0, 1, 1], [], []>} : vector<8x128xbf16>, vector<128x128xbf16>, vector<8x128xf32> -> vector<8x128xf32>
    %c0_54 = arith.constant 0 : index
    %c0_55 = arith.constant 0 : index
    %120 = vector.load %arg14[%c0_54, %c0_55] : memref<1x128xf32, #tpu.memory_space<vmem>>, vector<1x128xf32>
    %121 = vector.broadcast %120 : vector<1x128xf32> to vector<8x128xf32>
    %122 = arith.addf %119, %121 : vector<8x128xf32>
    %c0_56 = arith.constant 0 : index
    %c0_57 = arith.constant 0 : index
    %123 = vector.load %arg15[%c0_56, %c0_57] : memref<8x128xf32, #tpu.memory_space<vmem>>, vector<8x128xf32>
    tpu.vector_store %arg15[%c0_56, %c0_57], %122 {strides = array<i32>} : memref<8x128xf32, #tpu.memory_space<vmem>>, vector<8x128xf32>,
    return
  }
  func.func @transform_0(%arg0: i32) -> (i32, i32, i32) {
    %c0_i32 = arith.constant 0 : i32
    %c0_i32_0 = arith.constant 0 : i32
    %c0_i32_1 = arith.constant 0 : i32
    %c0_i32_2 = arith.constant 0 : i32
    return %c0_i32, %c0_i32_0, %c0_i32_1 : i32, i32, i32
  }
  func.func @transform_1(%arg0: i32) -> (i32, i32) {
    %c0_i32 = arith.constant 0 : i32
    %c0_i32_0 = arith.constant 0 : i32
    %c0_i32_1 = arith.constant 0 : i32
    return %c0_i32, %c0_i32_0 : i32, i32
  }
  func.func @transform_2(%arg0: i32) -> (i32, i32) {
    %c0_i32 = arith.constant 0 : i32
    %c0_i32_0 = arith.constant 0 : i32
    %c0_i32_1 = arith.constant 0 : i32
    return %c0_i32, %c0_i32_0 : i32, i32
  }
  func.func @transform_3(%arg0: i32) -> (i32, i32) {
    %c0_i32 = arith.constant 0 : i32
    %c0_i32_0 = arith.constant 0 : i32
    %c0_i32_1 = arith.constant 0 : i32
    return %c0_i32, %c0_i32_0 : i32, i32
  }
  func.func @transform_4(%arg0: i32) -> (i32, i32) {
    %c0_i32 = arith.constant 0 : i32
    %c0_i32_0 = arith.constant 0 : i32
    %c0_i32_1 = arith.constant 0 : i32
    return %c0_i32, %c0_i32_0 : i32, i32
  }
  func.func @transform_5(%arg0: i32) -> (i32, i32) {
    %c0_i32 = arith.constant 0 : i32
    %c0_i32_0 = arith.constant 0 : i32
    %c0_i32_1 = arith.constant 0 : i32
    return %c0_i32, %c0_i32_0 : i32, i32
  }
  func.func @transform_6(%arg0: i32) -> (i32, i32) {
    %c0_i32 = arith.constant 0 : i32
    %c0_i32_0 = arith.constant 0 : i32
    %c0_i32_1 = arith.constant 0 : i32
    return %c0_i32, %c0_i32_0 : i32, i32
  }
  func.func @transform_7(%arg0: i32) -> (i32, i32) {
    %c0_i32 = arith.constant 0 : i32
    %c0_i32_0 = arith.constant 0 : i32
    %c0_i32_1 = arith.constant 0 : i32
    return %c0_i32, %c0_i32_0 : i32, i32
  }
  func.func @transform_8(%arg0: i32) -> (i32, i32) {
    %c0_i32 = arith.constant 0 : i32
    %c0_i32_0 = arith.constant 0 : i32
    %c0_i32_1 = arith.constant 0 : i32
    return %c0_i32, %c0_i32_0 : i32, i32
  }
  func.func @transform_9(%arg0: i32) -> (i32, i32) {
    %c0_i32 = arith.constant 0 : i32
    %c0_i32_0 = arith.constant 0 : i32
    %c0_i32_1 = arith.constant 0 : i32
    return %c0_i32, %c0_i32_0 : i32, i32
  }
  func.func @transform_10(%arg0: i32) -> (i32, i32) {
    %c0_i32 = arith.constant 0 : i32
    %c0_i32_0 = arith.constant 0 : i32
    %c0_i32_1 = arith.constant 0 : i32
    return %c0_i32, %c0_i32_0 : i32, i32
  }
  func.func @transform_11(%arg0: i32) -> (i32, i32) {
    %c0_i32 = arith.constant 0 : i32
    %c0_i32_0 = arith.constant 0 : i32
    %c0_i32_1 = arith.constant 0 : i32
    return %c0_i32, %c0_i32_0 : i32, i32
  }
  func.func @transform_12(%arg0: i32) -> (i32, i32) {
    %c0_i32 = arith.constant 0 : i32
    %c0_i32_0 = arith.constant 0 : i32
    %c0_i32_1 = arith.constant 0 : i32
    return %c0_i32, %c0_i32_0 : i32, i32
  }
  func.func @transform_13(%arg0: i32) -> (i32, i32) {
    %c0_i32 = arith.constant 0 : i32
    %c0_i32_0 = arith.constant 0 : i32
    %c0_i32_1 = arith.constant 0 : i32
    return %c0_i32, %c0_i32_0 : i32, i32
  }
  func.func @transform_14(%arg0: i32) -> (i32, i32) {
    %c0_i32 = arith.constant 0 : i32
    %c0_i32_0 = arith.constant 0 : i32
    %c0_i32_1 = arith.constant 0 : i32
    return %c0_i32, %c0_i32_0 : i32, i32
  }
}

</mosaic_0001>

<llo_original>
// kernel: forward.2
$region0: #{forward.2}
  #allocation0 [shape = 'u32[]', space=smem, size = 0x4, offset = 0x4, fixed_abs, tag = 'smem constant byte address 0x4 - core index']
  #allocation1 [shape = 'u32[144,128]{1,0:T(1,128)}', space=vmem, size = 0x12000, scoped, tag = 'internal scratch']
  #allocation2 [shape = 'f32[8,512]{1,0:T(8,128)}', space=vmem, size = 0x4000, scoped, tag = 'scratch operand']
  %s0 = inlined_call_operand.vmem [shape: bf16[8,512], index: 0, kind: input, shape index: {}]
  %s1 = inlined_call_operand.hbm [shape: bf16[512,512], index: 1, kind: input, shape index: {}]
  %s2 = inlined_call_operand.vmem [shape: f32[2,8,512], index: 2, kind: output, shape index: {}]
  %s3 = sld [smem:[#allocation0]]
  $region53: #{forward.2} parent=0
    _
  %s5 = ssub.s32 1, %s3
  %s6 = scalar_select 0, %s5, %s3
  $region1: #{forward.2} parent=0
    #allocation3 [shape = 'u8[262144]{0}', space=vmem, size = 0x40000, scoped, tag = 'input window, operand 1']
    #allocation4 [shape = 's32[2]{0}', space=sflag, size = 0x8, scoped, tag = 'scoped memory for forward.2']
    %7 = vsyncpa [#allocation4], 0
    %s8 = scalar_lea.sflag [#allocation4], 1
    %9 = vsyncpa %s8, 0
    loop: start=0, step=1, limit=6
    $region2: #{forward.2} parent=1 // loop_pre_header
      _
    $region3: #{forward.2} parent=1 // loop_header
      %s11 = sphi 0, %s15
      %p12 = scmp.ge.s32.totalorder %s11, 6
      %s18 = sphi 0, %s30
      %s19 = sphi 0, %s26
      %s20 = sphi 0, %s18
      %s21 = sphi 0, %s19
      %s22 = sphi 0, %s20
      %s23 = sphi 0, %s21
      %s31 = sphi 0, %s31
      %s33 = sphi 0, %s31
      %s34 = sphi 0, %s33
      %s48 = sphi 0, %s34
      %s58 = sphi 0, %s60
      %s61 = sphi 0, %s58
      %s62 = sphi 0, %s61
      %s78 = sphi 0, %s62
      %s84 = sphi 0, %s86
      %s87 = sphi 0, %s84
      %s88 = sphi 0, %s87
      %s104 = sphi 0, %s88
    $region4: #{forward.2} parent=1 // loop_header_branch
      %14 = sbr.rel (%p12) target = $region8
    $region5: #{forward.2} parent=1 // loop_body
      %s16 = ssub.s32 %s11, 1
      %s17 = ssub.s32 %s11, 2
      %s24 = sadd.s32 1, %s19
      %p25 = scmp.ge.s32.totalorder %s24, 2
      %s26 = scalar_select %p25, 0, %s24
      %s27 = sadd.s32 1, %s18
      %s28 = scalar_select %p25, %s27, %s18
      %p29 = scmp.ge.s32.totalorder %s28, 2
      %s30 = scalar_select %p29, 0, %s28
      %s32 = sadd.s32 %s31, 1
      %p35 = scmp.eq.s32.totalorder %s11, 3
      %p36 = scmp.ne.s32.totalorder %s31, %s33
      %p37 = scmp.eq.s32.totalorder %s11, 0
      %p38 = por %p36, %p37
      %p39 = scmp.ne.s32.totalorder %s31, %s33
      %p40 = scmp.eq.s32.totalorder %s16, 3
      %p41 = por %p39, %p40
      %p42 = scmp.ne.s32.totalorder %s33, %s34
      %p43 = scmp.eq.s32.totalorder %s16, 0
      %p44 = por %p42, %p43
      %p45 = scmp.ne.s32.totalorder %s33, %s34
      %p46 = scmp.eq.s32.totalorder %s17, 3
      %p47 = por %p45, %p46
      %p49 = scmp.ne.s32.totalorder %s34, %s48
      %p50 = scmp.eq.s32.totalorder %s17, 0
      %p51 = por %p49, %p50
      %s52 = smul.u32 %s18, 2
      %s53 = sadd.s32 %s52, %s19
      %s54 = smul.u32 %s30, 2
      %s55 = sadd.s32 %s54, %s26
      %s56 = ssub.s32 %s53, %s55
      %p57 = scmp.eq.s32.totalorder %s56, 0
      %s59 = sadd.s32 %s58, 1
      %s60 = scalar_select %p57, %s58, %s59
      %p63 = pneg %p57
      %p64 = scmp.eq.s32.totalorder %s11, 3
      %p65 = por %p63, %p64
      %p66 = scmp.ne.s32.totalorder %s58, %s61
      %p67 = scmp.eq.s32.totalorder %s11, 0
      %p68 = por %p66, %p67
      %p69 = scmp.ne.s32.totalorder %s58, %s61
      %p70 = scmp.eq.s32.totalorder %s16, 3
      %p71 = por %p69, %p70
      %p72 = scmp.ne.s32.totalorder %s61, %s62
      %p73 = scmp.eq.s32.totalorder %s16, 0
      %p74 = por %p72, %p73
      %p75 = scmp.ne.s32.totalorder %s61, %s62
      %p76 = scmp.eq.s32.totalorder %s17, 3
      %p77 = por %p75, %p76
      %p79 = scmp.ne.s32.totalorder %s62, %s78
      %p80 = scmp.eq.s32.totalorder %s17, 0
      %p81 = por %p79, %p80
      %s82 = ssub.s32 %s18, %s30
      %p83 = scmp.eq.s32.totalorder %s82, 0
      %s85 = sadd.s32 %s84, 1
      %s86 = scalar_select %p83, %s84, %s85
      %p89 = pneg %p83
      %p90 = scmp.eq.s32.totalorder %s11, 3
      %p91 = por %p89, %p90
      %p92 = scmp.ne.s32.totalorder %s84, %s87
      %p93 = scmp.eq.s32.totalorder %s11, 0
      %p94 = por %p92, %p93
      %p95 = scmp.ne.s32.totalorder %s84, %s87
      %p96 = scmp.eq.s32.totalorder %s16, 3
      %p97 = por %p95, %p96
      %p98 = scmp.ne.s32.totalorder %s87, %s88
      %p99 = scmp.eq.s32.totalorder %s16, 0
      %p100 = por %p98, %p99
      %p101 = scmp.ne.s32.totalorder %s87, %s88
      %p102 = scmp.eq.s32.totalorder %s17, 3
      %p103 = por %p101, %p102
      %p105 = scmp.ne.s32.totalorder %s88, %s104
      %p106 = scmp.eq.s32.totalorder %s17, 0
      %p107 = por %p105, %p106
      %p108 = scmp.le.s32.totalorder 1, %s11
      %p109 = scmp.lt.s32.totalorder %s11, 5
      %p110 = pnand %p108, %p109
      %p111 = pneg %p110
      // Predicated region
      $region9: #{forward.2} parent=5 // pred_check
        _
      $region10: #{forward.2} parent=5 // pred_check_branch
        %113 = sbr.rel (%p110) target = $region12
      $region11: #{forward.2} parent=5 // pred_region
        %s114 = ssub.s32 %s11, 1
        // Predicated region
        $region13: #{forward.2} parent=11 // pred_check
          %p115 = pneg %p44
        $region14: #{forward.2} parent=11 // pred_check_branch
          %117 = sbr.rel (%p115) target = $region16
        $region15: #{forward.2} parent=11 // pred_region
          _
        $region16: #{forward.2} parent=11 // pred_fallthru
          _
      $region12: #{forward.2} parent=5 // pred_fallthru
        _
      %p118 = scmp.lt.s32.totalorder %s11, 4
      // Predicated region
      $region17: #{forward.2} parent=5 // pred_check
        %p119 = pneg %p118
      $region18: #{forward.2} parent=5 // pred_check_branch
        %121 = sbr.rel (%p119) target = $region20
      $region19: #{forward.2} parent=5 // pred_region
        // Predicated region
        $region21: #{forward.2} parent=19 // pred_check
          %p122 = pneg %p68
        $region22: #{forward.2} parent=19 // pred_check_branch
          %124 = sbr.rel (%p122) target = $region24
        $region23: #{forward.2} parent=19 // pred_region
          %s125 = sand.u32 %s58, 1
          %s126 = scalar_lea.sflag [#allocation4], %s125
          %s127 = sand.u32 %s58, 1
          %s128 = smul.addr %s127, 256
          %s129 = scalar_lea.vmem [#allocation3], %s128
          %s130 = smul.u32 %s18, 2
          %s131 = sadd.s32 %s130, %s19
          %s132 = smul.u32 16, %s131
          %s134 = ssub.s32 4096, 4096
          %135 = vsyncadd %s126, %s134
          %s136 = smul.addr %s132, 4
          %s137 = smul.addr %s136, 64
          %s138 = scalar_lea.hbm %s1, %s137
          %s139 = sshll.u32 %s129, 4
          %s140 = int_to_ptr.vmem [resolvable:$true] %s139
          %145 = dma.hbm_to_vmem [thread:$0]  %s138, 4096, %s140, %s126, 256, 256, 16
        $region24: #{forward.2} parent=19 // pred_fallthru
          _
      $region20: #{forward.2} parent=5 // pred_fallthru
        _
      %p146 = scmp.le.s32.totalorder 1, %s11
      %p147 = scmp.lt.s32.totalorder %s11, 5
      %p148 = pnand %p146, %p147
      %p149 = pneg %p148
      // Predicated region
      $region25: #{forward.2} parent=5 // pred_check
        _
      $region26: #{forward.2} parent=5 // pred_check_branch
        %151 = sbr.rel (%p148) target = $region28
      $region27: #{forward.2} parent=5 // pred_region
        %s152 = ssub.s32 %s11, 1
        %s153 = sand.u32 %s61, 1
        %s154 = scalar_lea.sflag [#allocation4], %s153
        %s155 = sand.u32 %s61, 1
        %s156 = smul.addr %s155, 256
        %s157 = scalar_lea.vmem [#allocation3], %s156
        // Predicated region
        $region29: #{forward.2} parent=27 // pred_check
          %p158 = pneg %p74
        $region30: #{forward.2} parent=27 // pred_check_branch
          %160 = sbr.rel (%p158) target = $region32
        $region31: #{forward.2} parent=27 // pred_region
          %161 = dma.done %s154, 4096
        $region32: #{forward.2} parent=27 // pred_fallthru
          _
        %p162 = pneg %p44
        %p163 = pneg %p41
        %s164 = sand.u32 %s61, 1
        %s165 = scalar_lea.sflag [#allocation4], %s164
        %s166 = sand.u32 %s61, 1
        %s167 = smul.addr %s166, 256
        %s168 = scalar_lea.vmem [#allocation3], %s167
        %p169 = pneg %p74
        %p170 = pneg %p71
        %p171 = pneg %p100
        %p172 = pneg %p97
        %p173 = scmp.lt.s32.totalorder %s20, 1
        %s174 = scalar_select %p173, %s20, 1
        %s175 = smul.addr %s174, 4
        %s176 = smul.addr %s175, 8
        %s177 = scalar_lea.vmem %s2, %s176
        %s178 = smul.u32 %s20, 2
        %s179 = sadd.s32 %s178, %s21
        %s180 = smul.u32 16, %s179
        %p181 = scmp.lt.s32.totalorder %s20, 1
        %s182 = scalar_select %p181, %s20, 1
        %s183 = smul.addr %s182, 4
        %s184 = smul.addr %s183, 8
        %s185 = scalar_lea.vmem %s2, %s184
        %p187 = scmp.eq.s32.totalorder %s21, 0
        // Predicated region
        $region33: #{forward.2} parent=27 // pred_check
          %p188 = pneg %p187
        $region34: #{forward.2} parent=27 // pred_check_branch
          %190 = sbr.rel (%p188) target = $region36
        $region35: #{forward.2} parent=27 // pred_region
          %191 = vst [vmem:[#allocation2] sm:$0xff] 0.0
          %192 = vst [vmem:[#allocation2 + $0x8] sm:$0xff] 0.0
          %193 = vst [vmem:[#allocation2 + $0x10] sm:$0xff] 0.0
          %194 = vst [vmem:[#allocation2 + $0x18] sm:$0xff] 0.0
        $region36: #{forward.2} parent=27 // pred_fallthru
          _
        %s195 = smul.u32 %s20, 2
        %s196 = sadd.s32 %s195, %s21
        %s197 = smul.u32 %s196, 128
        %s198 = sshra.s32 %s197, 7
        %s199 = sand.u32 %s197, 127
        %s200 = smul.addr %s198, 4
        %s201 = scalar_lea.vmem %s0, %s200
        %v202 = vld [vmem:[%s201] sm:$0xf]
        %v203 = vld [vmem:[#allocation2] sm:$0xff]
        %v204 = vld [vmem:[#allocation2 + $0x8] sm:$0xff]
        %v205 = vld [vmem:[#allocation2 + $0x10] sm:$0xff]
        %v206 = vld [vmem:[#allocation2 + $0x18] sm:$0xff]
        %v207 = vld [vmem:[%s157] sm:$0xff]
        %v208 = vld [vmem:[%s157 + $0x8] sm:$0xff]
        %v209 = vld [vmem:[%s157 + $0x10] sm:$0xff]
        %v210 = vld [vmem:[%s157 + $0x18] sm:$0xff]
        %v211 = vld [vmem:[%s157 + $0x20] sm:$0xff]
        %v212 = vld [vmem:[%s157 + $0x28] sm:$0xff]
        %v213 = vld [vmem:[%s157 + $0x30] sm:$0xff]
        %v214 = vld [vmem:[%s157 + $0x38] sm:$0xff]
        %v215 = vld [vmem:[%s157 + $0x40] sm:$0xff]
        %v216 = vld [vmem:[%s157 + $0x48] sm:$0xff]
        %v217 = vld [vmem:[%s157 + $0x50] sm:$0xff]
        %v218 = vld [vmem:[%s157 + $0x58] sm:$0xff]
        %v219 = vld [vmem:[%s157 + $0x60] sm:$0xff]
        %v220 = vld [vmem:[%s157 + $0x68] sm:$0xff]
        %v221 = vld [vmem:[%s157 + $0x70] sm:$0xff]
        %v222 = vld [vmem:[%s157 + $0x78] sm:$0xff]
        %v223 = vld [vmem:[%s157 + $0x80] sm:$0xff]
        %v224 = vld [vmem:[%s157 + $0x88] sm:$0xff]
        %v225 = vld [vmem:[%s157 + $0x90] sm:$0xff]
        %v226 = vld [vmem:[%s157 + $0x98] sm:$0xff]
        %v227 = vld [vmem:[%s157 + $0xa0] sm:$0xff]
        %v228 = vld [vmem:[%s157 + $0xa8] sm:$0xff]
        %v229 = vld [vmem:[%s157 + $0xb0] sm:$0xff]
        %v230 = vld [vmem:[%s157 + $0xb8] sm:$0xff]
        %v231 = vld [vmem:[%s157 + $0xc0] sm:$0xff]
        %v232 = vld [vmem:[%s157 + $0xc8] sm:$0xff]
        %v233 = vld [vmem:[%s157 + $0xd0] sm:$0xff]
        %v234 = vld [vmem:[%s157 + $0xd8] sm:$0xff]
        %v235 = vld [vmem:[%s157 + $0xe0] sm:$0xff]
        %v236 = vld [vmem:[%s157 + $0xe8] sm:$0xff]
        %v237 = vld [vmem:[%s157 + $0xf0] sm:$0xff]
        %v238 = vld [vmem:[%s157 + $0xf8] sm:$0xff]
        %v271 = vunpack.c.l.b16 %v207
        %v272 = vunpack.c.h.b16 %v207
        %v273 = vunpack.c.l.b16 %v208
        %v274 = vunpack.c.h.b16 %v208
        %v275 = vunpack.c.l.b16 %v209
        %v276 = vunpack.c.h.b16 %v209
        %v277 = vunpack.c.l.b16 %v210
        %v278 = vunpack.c.h.b16 %v210
        %v279 = vunpack.c.l.b16 %v211
        %v280 = vunpack.c.h.b16 %v211
        %v281 = vunpack.c.l.b16 %v212
        %v282 = vunpack.c.h.b16 %v212
        %v283 = vunpack.c.l.b16 %v213
        %v284 = vunpack.c.h.b16 %v213
        %v285 = vunpack.c.l.b16 %v214
        %v286 = vunpack.c.h.b16 %v214
        %v287 = vunpack.c.l.b16 %v215
        %v288 = vunpack.c.h.b16 %v215
        %v289 = vunpack.c.l.b16 %v216
        %v290 = vunpack.c.h.b16 %v216
        %v291 = vunpack.c.l.b16 %v217
        %v292 = vunpack.c.h.b16 %v217
        %v293 = vunpack.c.l.b16 %v218
        %v294 = vunpack.c.h.b16 %v218
        %v295 = vunpack.c.l.b16 %v219
        %v296 = vunpack.c.h.b16 %v219
        %v297 = vunpack.c.l.b16 %v220
        %v298 = vunpack.c.h.b16 %v220
        %v299 = vunpack.c.l.b16 %v221
        %v300 = vunpack.c.h.b16 %v221
        %v301 = vunpack.c.l.b16 %v222
        %v302 = vunpack.c.h.b16 %v222
        %v303 = vunpack.c.l.b16 %v223
        %v304 = vunpack.c.h.b16 %v223
        %v305 = vunpack.c.l.b16 %v224
        %v306 = vunpack.c.h.b16 %v224
        %v307 = vunpack.c.l.b16 %v225
        %v308 = vunpack.c.h.b16 %v225
        %v309 = vunpack.c.l.b16 %v226
        %v310 = vunpack.c.h.b16 %v226
        %v311 = vunpack.c.l.b16 %v227
        %v312 = vunpack.c.h.b16 %v227
        %v313 = vunpack.c.l.b16 %v228
        %v314 = vunpack.c.h.b16 %v228
        %v315 = vunpack.c.l.b16 %v229
        %v316 = vunpack.c.h.b16 %v229
        %v317 = vunpack.c.l.b16 %v230
        %v318 = vunpack.c.h.b16 %v230
        %v319 = vunpack.c.l.b16 %v231
        %v320 = vunpack.c.h.b16 %v231
        %v321 = vunpack.c.l.b16 %v232
        %v322 = vunpack.c.h.b16 %v232
        %v323 = vunpack.c.l.b16 %v233
        %v324 = vunpack.c.h.b16 %v233
        %v325 = vunpack.c.l.b16 %v234
        %v326 = vunpack.c.h.b16 %v234
        %v327 = vunpack.c.l.b16 %v235
        %v328 = vunpack.c.h.b16 %v235
        %v329 = vunpack.c.l.b16 %v236
        %v330 = vunpack.c.h.b16 %v236
        %v331 = vunpack.c.l.b16 %v237
        %v332 = vunpack.c.h.b16 %v237
        %v333 = vunpack.c.l.b16 %v238
        %v334 = vunpack.c.h.b16 %v238
        %v335 = vpack.c.b16 %v275, %v271
        %v336 = vpack.c.b16 %v276, %v272
        %v337 = vpack.c.b16 %v277, %v273
        %v338 = vpack.c.b16 %v278, %v274
        %v339 = vpack.c.b16 %v283, %v279
        %v340 = vpack.c.b16 %v284, %v280
        %v341 = vpack.c.b16 %v285, %v281
        %v342 = vpack.c.b16 %v286, %v282
        %v343 = vpack.c.b16 %v291, %v287
        %v344 = vpack.c.b16 %v292, %v288
        %v345 = vpack.c.b16 %v293, %v289
        %v346 = vpack.c.b16 %v294, %v290
        %v347 = vpack.c.b16 %v299, %v295
        %v348 = vpack.c.b16 %v300, %v296
        %v349 = vpack.c.b16 %v301, %v297
        %v350 = vpack.c.b16 %v302, %v298
        %v351 = vpack.c.b16 %v307, %v303
        %v352 = vpack.c.b16 %v308, %v304
        %v353 = vpack.c.b16 %v309, %v305
        %v354 = vpack.c.b16 %v310, %v306
        %v355 = vpack.c.b16 %v315, %v311
        %v356 = vpack.c.b16 %v316, %v312
        %v357 = vpack.c.b16 %v317, %v313
        %v358 = vpack.c.b16 %v318, %v314
        %v359 = vpack.c.b16 %v323, %v319
        %v360 = vpack.c.b16 %v324, %v320
        %v361 = vpack.c.b16 %v325, %v321
        %v362 = vpack.c.b16 %v326, %v322
        %v363 = vpack.c.b16 %v331, %v327
        %v364 = vpack.c.b16 %v332, %v328
        %v365 = vpack.c.b16 %v333, %v329
        %v366 = vpack.c.b16 %v334, %v330
        %399 = vmatprep.subr.bf16.mxu0 %v364
        %400 = vmatpush1.bf16.msra.mxu0 %v363
        %401 = vmatprep.subr.bf16.mxu0 %v360
        %402 = vmatpush1.bf16.msra.mxu0 %v359
        %403 = vmatprep.subr.bf16.mxu0 %v356
        %404 = vmatpush1.bf16.msra.mxu0 %v355
        %405 = vmatprep.subr.bf16.mxu0 %v352
        %406 = vmatpush1.bf16.msra.mxu0 %v351
        %407 = vmatprep.subr.bf16.mxu0 %v348
        %408 = vmatpush1.bf16.msra.mxu0 %v347
        %409 = vmatprep.subr.bf16.mxu0 %v344
        %410 = vmatpush1.bf16.msra.mxu0 %v343
        %411 = vmatprep.subr.bf16.mxu0 %v340
        %412 = vmatpush1.bf16.msra.mxu0 %v339
        %413 = vmatprep.subr.bf16.mxu0 %v336
        %414 = vmatpush1.bf16.msra.mxu0 %v335
        %415 = vmatprep.subr.bf16.mxu0 0
        %416 = vmatpush2.bf16.msra.mxu0 0
        %417 = vmatprep.subr.bf16.mxu0 0
        %418 = vmatpush2.bf16.msra.mxu0 0
        %419 = vmatprep.subr.bf16.mxu0 0
        %420 = vmatpush2.bf16.msra.mxu0 0
        %421 = vmatprep.subr.bf16.mxu0 0
        %422 = vmatpush2.bf16.msra.mxu0 0
        %423 = vmatprep.subr.bf16.mxu0 0
        %424 = vmatpush2.bf16.msra.mxu0 0
        %425 = vmatprep.subr.bf16.mxu0 0
        %426 = vmatpush2.bf16.msra.mxu0 0
        %427 = vmatprep.subr.bf16.mxu0 0
        %428 = vmatpush2.bf16.msra.mxu0 0
        %429 = vmatprep.subr.bf16.mxu0 0
        %430 = vmatpush2.bf16.msra.mxu0 0
        %431 = vmatprep.mubr.bf16.mxu0 0
        %432 = vmatmul.mubr.bf16.gmra.mxu0 %v202
        %v433 = vpop.f32.mrf.mxu0
        %v434 = vadd.f32 0.0, %v433
        %v435 = vpop.f32.mrf.mxu0
        %v436 = vadd.f32 0.0, %v435
        %v437 = vpop.f32.mrf.mxu0
        %v438 = vpop.f32.mrf.mxu0
        %439 = vdwg.mxu0
        %440 = vmatprep.subr.bf16.mxu0 %v366
        %441 = vmatpush1.bf16.msra.mxu0 %v365
        %442 = vmatprep.subr.bf16.mxu0 %v362
        %443 = vmatpush1.bf16.msra.mxu0 %v361
        %444 = vmatprep.subr.bf16.mxu0 %v358
        %445 = vmatpush1.bf16.msra.mxu0 %v357
        %446 = vmatprep.subr.bf16.mxu0 %v354
        %447 = vmatpush1.bf16.msra.mxu0 %v353
        %448 = vmatprep.subr.bf16.mxu0 %v350
        %449 = vmatpush1.bf16.msra.mxu0 %v349
        %450 = vmatprep.subr.bf16.mxu0 %v346
        %451 = vmatpush1.bf16.msra.mxu0 %v345
        %452 = vmatprep.subr.bf16.mxu0 %v342
        %453 = vmatpush1.bf16.msra.mxu0 %v341
        %454 = vmatprep.subr.bf16.mxu0 %v338
        %455 = vmatpush1.bf16.msra.mxu0 %v337
        %456 = vmatprep.subr.bf16.mxu0 0
        %457 = vmatpush2.bf16.msra.mxu0 0
        %458 = vmatprep.subr.bf16.mxu0 0
        %459 = vmatpush2.bf16.msra.mxu0 0
        %460 = vmatprep.subr.bf16.mxu0 0
        %461 = vmatpush2.bf16.msra.mxu0 0
        %462 = vmatprep.subr.bf16.mxu0 0
        %463 = vmatpush2.bf16.msra.mxu0 0
        %464 = vmatprep.subr.bf16.mxu0 0
        %465 = vmatpush2.bf16.msra.mxu0 0
        %466 = vmatprep.subr.bf16.mxu0 0
        %467 = vmatpush2.bf16.msra.mxu0 0
        %468 = vmatprep.subr.bf16.mxu0 0
        %469 = vmatpush2.bf16.msra.mxu0 0
        %470 = vmatprep.subr.bf16.mxu0 0
        %471 = vmatpush2.bf16.msra.mxu0 0
        %472 = vmatprep.mubr.bf16.mxu0 0
        %473 = vmatmul.mubr.bf16.gmra.mxu0 %v202
        %v474 = vpop.f32.mrf.mxu0
        %v475 = vadd.f32 0.0, %v474
        %v476 = vpop.f32.mrf.mxu0
        %v477 = vadd.f32 0.0, %v476
        %v478 = vpop.f32.mrf.mxu0
        %v479 = vpop.f32.mrf.mxu0
        %480 = vdwg.mxu0
        %v481 = vadd.f32 %v203, %v434
        %v482 = vadd.f32 %v204, %v436
        %v483 = vadd.f32 %v205, %v475
        %v484 = vadd.f32 %v206, %v477
        %485 = vst [vmem:[#allocation2] sm:$0xff] %v481
        %486 = vst [vmem:[#allocation2 + $0x8] sm:$0xff] %v482
        %487 = vst [vmem:[#allocation2 + $0x10] sm:$0xff] %v483
        %488 = vst [vmem:[#allocation2 + $0x18] sm:$0xff] %v484
        %p489 = scmp.eq.s32.totalorder %s21, 1
        // Predicated region
        $region37: #{forward.2} parent=27 // pred_check
          %p490 = pneg %p489
        $region38: #{forward.2} parent=27 // pred_check_branch
          %492 = sbr.rel (%p490) target = $region40
        $region39: #{forward.2} parent=27 // pred_region
          %v493 = vld [vmem:[#allocation2] sm:$0xff]
          %v494 = vld [vmem:[#allocation2 + $0x8] sm:$0xff]
          %v495 = vld [vmem:[#allocation2 + $0x10] sm:$0xff]
          %v496 = vld [vmem:[#allocation2 + $0x18] sm:$0xff]
          %497 = vst [vmem:[%s185] sm:$0xff] %v493
          %498 = vst [vmem:[%s185 + $0x8] sm:$0xff] %v494
          %499 = vst [vmem:[%s185 + $0x10] sm:$0xff] %v495
          %500 = vst [vmem:[%s185 + $0x18] sm:$0xff] %v496
        $region40: #{forward.2} parent=27 // pred_fallthru
          _
        %p501 = scmp.lt.s32.totalorder %s20, 1
        %s502 = scalar_select %p501, %s20, 1
        %s503 = smul.addr %s502, 4
        %s504 = smul.addr %s503, 8
        %s505 = scalar_lea.vmem %s2, %s504
        // Predicated region
        $region41: #{forward.2} parent=27 // pred_check
          %p506 = pneg %p97
        $region42: #{forward.2} parent=27 // pred_check_branch
          %508 = sbr.rel (%p506) target = $region44
        $region43: #{forward.2} parent=27 // pred_region
          _
        $region44: #{forward.2} parent=27 // pred_fallthru
          _
      $region28: #{forward.2} parent=5 // pred_fallthru
        _
      %p509 = scmp.le.s32.totalorder 2, %s11
      // Predicated region
      $region45: #{forward.2} parent=5 // pred_check
        %p510 = pneg %p509
      $region46: #{forward.2} parent=5 // pred_check_branch
        %512 = sbr.rel (%p510) target = $region48
      $region47: #{forward.2} parent=5 // pred_region
        %s513 = ssub.s32 %s11, 2
        // Predicated region
        $region49: #{forward.2} parent=47 // pred_check
          %p514 = pneg %p103
        $region50: #{forward.2} parent=47 // pred_check_branch
          %516 = sbr.rel (%p514) target = $region52
        $region51: #{forward.2} parent=47 // pred_region
          %p517 = scmp.lt.s32.totalorder %s22, 1
          %s518 = scalar_select %p517, %s22, 1
          %s519 = smul.addr %s518, 4
          %s520 = smul.addr %s519, 8
          %s521 = scalar_lea.vmem %s2, %s520
        $region52: #{forward.2} parent=47 // pred_fallthru
          _
      $region48: #{forward.2} parent=5 // pred_fallthru
        _
    $region6: #{forward.2} parent=1 // loop_footer
      %s15 = sadd.s32 1, %s11
    $region7: #{forward.2} parent=1 // loop_footer_branch
      %10 = sbr.rel target = $region3
    $region8: #{forward.2} parent=1 // loop_exit
      _
    %522 = vsyncpa [#allocation4], 1
    %s523 = scalar_lea.sflag [#allocation4], 1
    %524 = vsyncpa %s523, 1

// kernel: forward.3
$region0: #{forward.3}
  #allocation0 [shape = 'u32[]', space=smem, size = 0x4, offset = 0x4, fixed_abs, tag = 'smem constant byte address 0x4 - core index']
  #allocation1 [shape = 'u32[144,128]{1,0:T(1,128)}', space=vmem, size = 0x12000, scoped, tag = 'internal scratch']
  %s0 = inlined_call_operand.vmem [shape: f32[2,8,512], index: 0, kind: input, shape index: {}]
  %s1 = inlined_call_operand.vmem [shape: f32[1,512], index: 1, kind: input, shape index: {}]
  %s2 = inlined_call_operand.vmem [shape: f32[1,256], index: 2, kind: input, shape index: {}]
  %s3 = inlined_call_operand.vmem [shape: f32[1,256], index: 3, kind: input, shape index: {}, may-alias: {3,5}]
  %s4 = inlined_call_operand.vmem [shape: bf16[256,256], index: 4, kind: input, shape index: {}]
  %s5 = inlined_call_operand.vmem [shape: f32[1,256], index: 5, kind: input, shape index: {}, may-alias: {3,5}]
  %s6 = inlined_call_operand.vmem [shape: f32[1,128], index: 6, kind: input, shape index: {}, may-alias: {6,10}]
  %s7 = inlined_call_operand.vmem [shape: f32[1,128], index: 7, kind: input, shape index: {}, may-alias: {7,9,11,13}]
  %s8 = inlined_call_operand.vmem [shape: bf16[128,128], index: 8, kind: input, shape index: {}]
  %s9 = inlined_call_operand.vmem [shape: f32[1,128], index: 9, kind: input, shape index: {}, may-alias: {7,9,11,13}]
  %s10 = inlined_call_operand.vmem [shape: f32[1,128], index: 10, kind: input, shape index: {}, may-alias: {6,10}]
  %s11 = inlined_call_operand.vmem [shape: f32[1,128], index: 11, kind: input, shape index: {}, may-alias: {7,9,11,13}]
  %s12 = inlined_call_operand.vmem [shape: bf16[128,128], index: 12, kind: input, shape index: {}]
  %s13 = inlined_call_operand.vmem [shape: f32[1,128], index: 13, kind: input, shape index: {}, may-alias: {7,9,11,13}]
  %s14 = inlined_call_operand.vmem [shape: f32[8,128], index: 14, kind: output, shape index: {}]
  %s15 = sld [smem:[#allocation0]]
  $region66: #{forward.3} parent=0
    _
  %s17 = ssub.s32 1, %s15
  %s18 = scalar_select 0, %s17, %s15
  // Predicated region
  $region2: #{forward.3} parent=0 // pred_check
    _
  $region3: #{forward.3} parent=0 // pred_check_branch
    %20 = sbr.rel (0) target = $region5
  $region4: #{forward.3} parent=0 // pred_region
    _
  $region5: #{forward.3} parent=0 // pred_fallthru
    _
  // Predicated region
  $region6: #{forward.3} parent=0 // pred_check
    _
  $region7: #{forward.3} parent=0 // pred_check_branch
    %22 = sbr.rel (0) target = $region9
  $region8: #{forward.3} parent=0 // pred_region
    _
  $region9: #{forward.3} parent=0 // pred_fallthru
    _
  // Predicated region
  $region10: #{forward.3} parent=0 // pred_check
    _
  $region11: #{forward.3} parent=0 // pred_check_branch
    %24 = sbr.rel (0) target = $region13
  $region12: #{forward.3} parent=0 // pred_region
    _
  $region13: #{forward.3} parent=0 // pred_fallthru
    _
  // Predicated region
  $region14: #{forward.3} parent=0 // pred_check
    _
  $region15: #{forward.3} parent=0 // pred_check_branch
    %26 = sbr.rel (0) target = $region17
  $region16: #{forward.3} parent=0 // pred_region
    _
  $region17: #{forward.3} parent=0 // pred_fallthru
    _
  // Predicated region
  $region18: #{forward.3} parent=0 // pred_check
    _
  $region19: #{forward.3} parent=0 // pred_check_branch
    %28 = sbr.rel (0) target = $region21
  $region20: #{forward.3} parent=0 // pred_region
    _
  $region21: #{forward.3} parent=0 // pred_fallthru
    _
  // Predicated region
  $region22: #{forward.3} parent=0 // pred_check
    _
  $region23: #{forward.3} parent=0 // pred_check_branch
    %30 = sbr.rel (0) target = $region25
  $region24: #{forward.3} parent=0 // pred_region
    _
  $region25: #{forward.3} parent=0 // pred_fallthru
    _
  // Predicated region
  $region26: #{forward.3} parent=0 // pred_check
    _
  $region27: #{forward.3} parent=0 // pred_check_branch
    %32 = sbr.rel (0) target = $region29
  $region28: #{forward.3} parent=0 // pred_region
    _
  $region29: #{forward.3} parent=0 // pred_fallthru
    _
  // Predicated region
  $region30: #{forward.3} parent=0 // pred_check
    _
  $region31: #{forward.3} parent=0 // pred_check_branch
    %34 = sbr.rel (0) target = $region33
  $region32: #{forward.3} parent=0 // pred_region
    _
  $region33: #{forward.3} parent=0 // pred_fallthru
    _
  // Predicated region
  $region34: #{forward.3} parent=0 // pred_check
    _
  $region35: #{forward.3} parent=0 // pred_check_branch
    %36 = sbr.rel (0) target = $region37
  $region36: #{forward.3} parent=0 // pred_region
    _
  $region37: #{forward.3} parent=0 // pred_fallthru
    _
  // Predicated region
  $region38: #{forward.3} parent=0 // pred_check
    _
  $region39: #{forward.3} parent=0 // pred_check_branch
    %38 = sbr.rel (0) target = $region41
  $region40: #{forward.3} parent=0 // pred_region
    _
  $region41: #{forward.3} parent=0 // pred_fallthru
    _
  // Predicated region
  $region42: #{forward.3} parent=0 // pred_check
    _
  $region43: #{forward.3} parent=0 // pred_check_branch
    %40 = sbr.rel (0) target = $region45
  $region44: #{forward.3} parent=0 // pred_region
    _
  $region45: #{forward.3} parent=0 // pred_fallthru
    _
  // Predicated region
  $region46: #{forward.3} parent=0 // pred_check
    _
  $region47: #{forward.3} parent=0 // pred_check_branch
    %42 = sbr.rel (0) target = $region49
  $region48: #{forward.3} parent=0 // pred_region
    _
  $region49: #{forward.3} parent=0 // pred_fallthru
    _
  // Predicated region
  $region50: #{forward.3} parent=0 // pred_check
    _
  $region51: #{forward.3} parent=0 // pred_check_branch
    %44 = sbr.rel (0) target = $region53
  $region52: #{forward.3} parent=0 // pred_region
    _
  $region53: #{forward.3} parent=0 // pred_fallthru
    _
  // Predicated region
  $region54: #{forward.3} parent=0 // pred_check
    _
  $region55: #{forward.3} parent=0 // pred_check_branch
    %46 = sbr.rel (0) target = $region57
  $region56: #{forward.3} parent=0 // pred_region
    _
  $region57: #{forward.3} parent=0 // pred_fallthru
    _
  %v48 = vld [vmem:[%s0] sm:$0xff]
  %v49 = vld [vmem:[%s0 + $0x8] sm:$0xff]
  %v50 = vld [vmem:[%s0 + $0x10] sm:$0xff]
  %v51 = vld [vmem:[%s0 + $0x18] sm:$0xff]
  %s52 = scalar_lea.vmem %s0, 32
  %v53 = vld [vmem:[%s52] sm:$0xff]
  %v54 = vld [vmem:[%s52 + $0x8] sm:$0xff]
  %v55 = vld [vmem:[%s52 + $0x10] sm:$0xff]
  %v56 = vld [vmem:[%s52 + $0x18] sm:$0xff]
  %v57 = vadd.f32 %v48, %v53
  %v58 = vadd.f32 %v49, %v54
  %v59 = vadd.f32 %v50, %v55
  %v60 = vadd.f32 %v51, %v56
  %v61 = vld [vmem:[%s1] sm:$0xf]
  %v63 = vlaneseq
  %v64 = vshrl.u32 %v63, 7
  %v65 = vsub.s32 0, %v64
  %v66 = vrot.slane %v61, %v65
  %v67 = vlaneseq
  %v68 = vshrl.u32 %v67, 7
  %v69 = vsub.s32 1, %v68
  %v70 = vrot.slane %v61, %v69
  %v71 = vlaneseq
  %v72 = vshrl.u32 %v71, 7
  %v73 = vsub.s32 2, %v72
  %v74 = vrot.slane %v61, %v73
  %v75 = vlaneseq
  %v76 = vshrl.u32 %v75, 7
  %v77 = vsub.s32 3, %v76
  %v78 = vrot.slane %v61, %v77
  %v83 = vadd.f32 %v57, %v66
  %v84 = vadd.f32 %v58, %v70
  %v85 = vadd.f32 %v59, %v74
  %v86 = vadd.f32 %v60, %v78
  %v87 = vld [vmem:[%s2] sm:$0x3]
  %v88 = vld [vmem:[%s3] sm:$0x3]
  %v89 = vadd.f32 %v83, %v84
  %90 = vadd.xlane.f32.xlu0 %v89
  %v91 = vpop.xlane.xlu0 %90
  %v92 = vmul.f32 %v91, 0.00390625
  %v93 = vmul.f32 %v83, %v83
  %v94 = vmul.f32 %v84, %v84
  %v95 = vadd.f32 %v93, %v94
  %96 = vadd.xlane.f32.xlu0 %v95
  %v97 = vpop.xlane.xlu0 %96
  %v98 = vmul.f32 %v97, 0.00390625
  %v99 = vmul.f32 %v92, %v92
  %v100 = vsub.f32 %v98, %v99
  %v101 = vmax.f32 %v100, 0.0
  %v102 = vsub.f32 %v83, %v92
  %v103 = vsub.f32 %v84, %v92
  %v104 = vadd.f32 %v101, 1e-05
  %v105 = vrsqrt.pop %v104
  %v106 = vmul.f32 %v102, %v105
  %v107 = vmul.f32 %v103, %v105
  %v109 = vlaneseq
  %v110 = vshrl.u32 %v109, 7
  %v111 = vsub.s32 0, %v110
  %v112 = vrot.slane %v87, %v111
  %v113 = vlaneseq
  %v114 = vshrl.u32 %v113, 7
  %v115 = vsub.s32 1, %v114
  %v116 = vrot.slane %v87, %v115
  %v119 = vmul.f32 %v106, %v112
  %v120 = vmul.f32 %v107, %v116
  %v122 = vlaneseq
  %v123 = vshrl.u32 %v122, 7
  %v124 = vsub.s32 0, %v123
  %v125 = vrot.slane %v88, %v124
  %v126 = vlaneseq
  %v127 = vshrl.u32 %v126, 7
  %v128 = vsub.s32 1, %v127
  %v129 = vrot.slane %v88, %v128
  %v132 = vadd.f32 %v119, %v125
  %v133 = vadd.f32 %v120, %v129
  %v134 = vmax.f32 %v132, 0.0
  %v135 = vmax.f32 %v133, 0.0
  %v136 = vadd.f32 %v134, %v85
  %v137 = vadd.f32 %v135, %v86
  %v138 = vmax.f32 %v136, 0.0
  %v139 = vmax.f32 %v137, 0.0
  %v140 = vpack.c.bf16 %v138, %v138
  %v141 = vpack.c.bf16 %v139, %v139
  %v142 = vld [vmem:[%s4] sm:$0xff]
  %v143 = vld [vmem:[%s4 + $0x8] sm:$0xff]
  %v144 = vld [vmem:[%s4 + $0x10] sm:$0xff]
  %v145 = vld [vmem:[%s4 + $0x18] sm:$0xff]
  %v146 = vld [vmem:[%s4 + $0x20] sm:$0xff]
  %v147 = vld [vmem:[%s4 + $0x28] sm:$0xff]
  %v148 = vld [vmem:[%s4 + $0x30] sm:$0xff]
  %v149 = vld [vmem:[%s4 + $0x38] sm:$0xff]
  %v150 = vld [vmem:[%s4 + $0x40] sm:$0xff]
  %v151 = vld [vmem:[%s4 + $0x48] sm:$0xff]
  %v152 = vld [vmem:[%s4 + $0x50] sm:$0xff]
  %v153 = vld [vmem:[%s4 + $0x58] sm:$0xff]
  %v154 = vld [vmem:[%s4 + $0x60] sm:$0xff]
  %v155 = vld [vmem:[%s4 + $0x68] sm:$0xff]
  %v156 = vld [vmem:[%s4 + $0x70] sm:$0xff]
  %v157 = vld [vmem:[%s4 + $0x78] sm:$0xff]
  %v158 = vld [vmem:[%s4 + $0x80] sm:$0xff]
  %v159 = vld [vmem:[%s4 + $0x88] sm:$0xff]
  %v160 = vld [vmem:[%s4 + $0x90] sm:$0xff]
  %v161 = vld [vmem:[%s4 + $0x98] sm:$0xff]
  %v162 = vld [vmem:[%s4 + $0xa0] sm:$0xff]
  %v163 = vld [vmem:[%s4 + $0xa8] sm:$0xff]
  %v164 = vld [vmem:[%s4 + $0xb0] sm:$0xff]
  %v165 = vld [vmem:[%s4 + $0xb8] sm:$0xff]
  %v166 = vld [vmem:[%s4 + $0xc0] sm:$0xff]
  %v167 = vld [vmem:[%s4 + $0xc8] sm:$0xff]
  %v168 = vld [vmem:[%s4 + $0xd0] sm:$0xff]
  %v169 = vld [vmem:[%s4 + $0xd8] sm:$0xff]
  %v170 = vld [vmem:[%s4 + $0xe0] sm:$0xff]
  %v171 = vld [vmem:[%s4 + $0xe8] sm:$0xff]
  %v172 = vld [vmem:[%s4 + $0xf0] sm:$0xff]
  %v173 = vld [vmem:[%s4 + $0xf8] sm:$0xff]
  %v174 = vld [vmem:[%s5] sm:$0x3]
  %v176 = vlaneseq
  %v177 = vshrl.u32 %v176, 7
  %v178 = vsub.s32 0, %v177
  %v179 = vrot.slane %v174, %v178
  %v180 = vlaneseq
  %v181 = vshrl.u32 %v180, 7
  %v182 = vsub.s32 1, %v181
  %v183 = vrot.slane %v174, %v182
  %v218 = vunpack.c.l.b16 %v142
  %v219 = vunpack.c.h.b16 %v142
  %v220 = vunpack.c.l.b16 %v143
  %v221 = vunpack.c.h.b16 %v143
  %v222 = vunpack.c.l.b16 %v144
  %v223 = vunpack.c.h.b16 %v144
  %v224 = vunpack.c.l.b16 %v145
  %v225 = vunpack.c.h.b16 %v145
  %v226 = vunpack.c.l.b16 %v146
  %v227 = vunpack.c.h.b16 %v146
  %v228 = vunpack.c.l.b16 %v147
  %v229 = vunpack.c.h.b16 %v147
  %v230 = vunpack.c.l.b16 %v148
  %v231 = vunpack.c.h.b16 %v148
  %v232 = vunpack.c.l.b16 %v149
  %v233 = vunpack.c.h.b16 %v149
  %v234 = vunpack.c.l.b16 %v150
  %v235 = vunpack.c.h.b16 %v150
  %v236 = vunpack.c.l.b16 %v151
  %v237 = vunpack.c.h.b16 %v151
  %v238 = vunpack.c.l.b16 %v152
  %v239 = vunpack.c.h.b16 %v152
  %v240 = vunpack.c.l.b16 %v153
  %v241 = vunpack.c.h.b16 %v153
  %v242 = vunpack.c.l.b16 %v154
  %v243 = vunpack.c.h.b16 %v154
  %v244 = vunpack.c.l.b16 %v155
  %v245 = vunpack.c.h.b16 %v155
  %v246 = vunpack.c.l.b16 %v156
  %v247 = vunpack.c.h.b16 %v156
  %v248 = vunpack.c.l.b16 %v157
  %v249 = vunpack.c.h.b16 %v157
  %v250 = vunpack.c.l.b16 %v158
  %v251 = vunpack.c.h.b16 %v158
  %v252 = vunpack.c.l.b16 %v159
  %v253 = vunpack.c.h.b16 %v159
  %v254 = vunpack.c.l.b16 %v160
  %v255 = vunpack.c.h.b16 %v160
  %v256 = vunpack.c.l.b16 %v161
  %v257 = vunpack.c.h.b16 %v161
  %v258 = vunpack.c.l.b16 %v162
  %v259 = vunpack.c.h.b16 %v162
  %v260 = vunpack.c.l.b16 %v163
  %v261 = vunpack.c.h.b16 %v163
  %v262 = vunpack.c.l.b16 %v164
  %v263 = vunpack.c.h.b16 %v164
  %v264 = vunpack.c.l.b16 %v165
  %v265 = vunpack.c.h.b16 %v165
  %v266 = vunpack.c.l.b16 %v166
  %v267 = vunpack.c.h.b16 %v166
  %v268 = vunpack.c.l.b16 %v167
  %v269 = vunpack.c.h.b16 %v167
  %v270 = vunpack.c.l.b16 %v168
  %v271 = vunpack.c.h.b16 %v168
  %v272 = vunpack.c.l.b16 %v169
  %v273 = vunpack.c.h.b16 %v169
  %v274 = vunpack.c.l.b16 %v170
  %v275 = vunpack.c.h.b16 %v170
  %v276 = vunpack.c.l.b16 %v171
  %v277 = vunpack.c.h.b16 %v171
  %v278 = vunpack.c.l.b16 %v172
  %v279 = vunpack.c.h.b16 %v172
  %v280 = vunpack.c.l.b16 %v173
  %v281 = vunpack.c.h.b16 %v173
  %v282 = vpack.c.b16 %v220, %v218
  %v283 = vpack.c.b16 %v221, %v219
  %v284 = vpack.c.b16 %v224, %v222
  %v285 = vpack.c.b16 %v225, %v223
  %v286 = vpack.c.b16 %v228, %v226
  %v287 = vpack.c.b16 %v229, %v227
  %v288 = vpack.c.b16 %v232, %v230
  %v289 = vpack.c.b16 %v233, %v231
  %v290 = vpack.c.b16 %v236, %v234
  %v291 = vpack.c.b16 %v237, %v235
  %v292 = vpack.c.b16 %v240, %v238
  %v293 = vpack.c.b16 %v241, %v239
  %v294 = vpack.c.b16 %v244, %v242
  %v295 = vpack.c.b16 %v245, %v243
  %v296 = vpack.c.b16 %v248, %v246
  %v297 = vpack.c.b16 %v249, %v247
  %v298 = vpack.c.b16 %v252, %v250
  %v299 = vpack.c.b16 %v253, %v251
  %v300 = vpack.c.b16 %v256, %v254
  %v301 = vpack.c.b16 %v257, %v255
  %v302 = vpack.c.b16 %v260, %v258
  %v303 = vpack.c.b16 %v261, %v259
  %v304 = vpack.c.b16 %v264, %v262
  %v305 = vpack.c.b16 %v265, %v263
  %v306 = vpack.c.b16 %v268, %v266
  %v307 = vpack.c.b16 %v269, %v267
  %v308 = vpack.c.b16 %v272, %v270
  %v309 = vpack.c.b16 %v273, %v271
  %v310 = vpack.c.b16 %v276, %v274
  %v311 = vpack.c.b16 %v277, %v275
  %v312 = vpack.c.b16 %v280, %v278
  %v313 = vpack.c.b16 %v281, %v279
  %346 = vmatprep.subr.bf16.mxu0 %v297
  %347 = vmatpush1.bf16.msra.mxu0 %v296
  %348 = vmatprep.subr.bf16.mxu0 %v295
  %349 = vmatpush1.bf16.msra.mxu0 %v294
  %350 = vmatprep.subr.bf16.mxu0 %v293
  %351 = vmatpush1.bf16.msra.mxu0 %v292
  %352 = vmatprep.subr.bf16.mxu0 %v291
  %353 = vmatpush1.bf16.msra.mxu0 %v290
  %354 = vmatprep.subr.bf16.mxu0 %v289
  %355 = vmatpush1.bf16.msra.mxu0 %v288
  %356 = vmatprep.subr.bf16.mxu0 %v287
  %357 = vmatpush1.bf16.msra.mxu0 %v286
  %358 = vmatprep.subr.bf16.mxu0 %v285
  %359 = vmatpush1.bf16.msra.mxu0 %v284
  %360 = vmatprep.subr.bf16.mxu0 %v283
  %361 = vmatpush1.bf16.msra.mxu0 %v282
  %362 = vmatprep.subr.bf16.mxu0 %v313
  %363 = vmatpush2.bf16.msra.mxu0 %v312
  %364 = vmatprep.subr.bf16.mxu0 %v311
  %365 = vmatpush2.bf16.msra.mxu0 %v310
  %366 = vmatprep.subr.bf16.mxu0 %v309
  %367 = vmatpush2.bf16.msra.mxu0 %v308
  %368 = vmatprep.subr.bf16.mxu0 %v307
  %369 = vmatpush2.bf16.msra.mxu0 %v306
  %370 = vmatprep.subr.bf16.mxu0 %v305
  %371 = vmatpush2.bf16.msra.mxu0 %v304
  %372 = vmatprep.subr.bf16.mxu0 %v303
  %373 = vmatpush2.bf16.msra.mxu0 %v302
  %374 = vmatprep.subr.bf16.mxu0 %v301
  %375 = vmatpush2.bf16.msra.mxu0 %v300
  %376 = vmatprep.subr.bf16.mxu0 %v299
  %377 = vmatpush2.bf16.msra.mxu0 %v298
  %378 = vmatprep.mubr.bf16.mxu0 %v141
  %379 = vmatmul.mubr.bf16.gmra.mxu0 %v140
  %v380 = vpop.f32.mrf.mxu0
  %v381 = vadd.f32 %v179, %v380
  %v382 = vpop.f32.mrf.mxu0
  %v383 = vadd.f32 %v183, %v382
  %v384 = vpop.f32.mrf.mxu0
  %v385 = vpop.f32.mrf.mxu0
  %386 = vdwg.mxu0
  %v387 = vld [vmem:[%s6] sm:$0x1]
  %v388 = vld [vmem:[%s7] sm:$0x1]
  %389 = vadd.xlane.f32.xlu0 %v381
  %v390 = vpop.xlane.xlu0 %389
  %v391 = vmul.f32 %v390, 0.0078125
  %v392 = vmul.f32 %v381, %v381
  %393 = vadd.xlane.f32.xlu0 %v392
  %v394 = vpop.xlane.xlu0 %393
  %v395 = vmul.f32 %v394, 0.0078125
  %v396 = vmul.f32 %v391, %v391
  %v397 = vsub.f32 %v395, %v396
  %v398 = vmax.f32 %v397, 0.0
  %v399 = vsub.f32 %v381, %v391
  %v400 = vadd.f32 %v398, 1e-05
  %v401 = vrsqrt.pop %v400
  %v402 = vmul.f32 %v399, %v401
  %v404 = vlaneseq
  %v405 = vshrl.u32 %v404, 7
  %v406 = vsub.s32 0, %v405
  %v407 = vrot.slane %v387, %v406
  %v409 = vmul.f32 %v402, %v407
  %v411 = vlaneseq
  %v412 = vshrl.u32 %v411, 7
  %v413 = vsub.s32 0, %v412
  %v414 = vrot.slane %v388, %v413
  %v416 = vadd.f32 %v409, %v414
  %v417 = vmax.f32 %v416, 0.0
  %v418 = vadd.f32 %v417, %v383
  %v419 = vmax.f32 %v418, 0.0
  %v420 = vpack.c.bf16 %v419, %v419
  %v421 = vld [vmem:[%s8] sm:$0xf]
  %v422 = vld [vmem:[%s8 + $0x4] sm:$0xf]
  %v423 = vld [vmem:[%s8 + $0x8] sm:$0xf]
  %v424 = vld [vmem:[%s8 + $0xc] sm:$0xf]
  %v425 = vld [vmem:[%s8 + $0x10] sm:$0xf]
  %v426 = vld [vmem:[%s8 + $0x14] sm:$0xf]
  %v427 = vld [vmem:[%s8 + $0x18] sm:$0xf]
  %v428 = vld [vmem:[%s8 + $0x1c] sm:$0xf]
  %v429 = vld [vmem:[%s8 + $0x20] sm:$0xf]
  %v430 = vld [vmem:[%s8 + $0x24] sm:$0xf]
  %v431 = vld [vmem:[%s8 + $0x28] sm:$0xf]
  %v432 = vld [vmem:[%s8 + $0x2c] sm:$0xf]
  %v433 = vld [vmem:[%s8 + $0x30] sm:$0xf]
  %v434 = vld [vmem:[%s8 + $0x34] sm:$0xf]
  %v435 = vld [vmem:[%s8 + $0x38] sm:$0xf]
  %v436 = vld [vmem:[%s8 + $0x3c] sm:$0xf]
  %v437 = vld [vmem:[%s9] sm:$0x1]
  %v439 = vlaneseq
  %v440 = vshrl.u32 %v439, 7
  %v441 = vsub.s32 0, %v440
  %v442 = vrot.slane %v437, %v441
  %v460 = vunpack.c.l.b16 %v421
  %v461 = vunpack.c.l.b16 %v422
  %v462 = vunpack.c.l.b16 %v423
  %v463 = vunpack.c.l.b16 %v424
  %v464 = vunpack.c.l.b16 %v425
  %v465 = vunpack.c.l.b16 %v426
  %v466 = vunpack.c.l.b16 %v427
  %v467 = vunpack.c.l.b16 %v428
  %v468 = vunpack.c.l.b16 %v429
  %v469 = vunpack.c.l.b16 %v430
  %v470 = vunpack.c.l.b16 %v431
  %v471 = vunpack.c.l.b16 %v432
  %v472 = vunpack.c.l.b16 %v433
  %v473 = vunpack.c.l.b16 %v434
  %v474 = vunpack.c.l.b16 %v435
  %v475 = vunpack.c.l.b16 %v436
  %v476 = vpack.c.b16 %v461, %v460
  %v477 = vpack.c.b16 %v463, %v462
  %v478 = vpack.c.b16 %v465, %v464
  %v479 = vpack.c.b16 %v467, %v466
  %v480 = vpack.c.b16 %v469, %v468
  %v481 = vpack.c.b16 %v471, %v470
  %v482 = vpack.c.b16 %v473, %v472
  %v483 = vpack.c.b16 %v475, %v474
  %492 = vmatprep.subr.bf16.mxu0 0
  %493 = vmatpush1.bf16.msra.mxu0 %v483
  %494 = vmatprep.subr.bf16.mxu0 0
  %495 = vmatpush1.bf16.msra.mxu0 %v482
  %496 = vmatprep.subr.bf16.mxu0 0
  %497 = vmatpush1.bf16.msra.mxu0 %v481
  %498 = vmatprep.subr.bf16.mxu0 0
  %499 = vmatpush1.bf16.msra.mxu0 %v480
  %500 = vmatprep.subr.bf16.mxu0 0
  %501 = vmatpush1.bf16.msra.mxu0 %v479
  %502 = vmatprep.subr.bf16.mxu0 0
  %503 = vmatpush1.bf16.msra.mxu0 %v478
  %504 = vmatprep.subr.bf16.mxu0 0
  %505 = vmatpush1.bf16.msra.mxu0 %v477
  %506 = vmatprep.subr.bf16.mxu0 0
  %507 = vmatpush1.bf16.msra.mxu0 %v476
  %508 = vmatprep.subr.bf16.mxu0 0
  %509 = vmatpush2.bf16.msra.mxu0 0
  %510 = vmatprep.subr.bf16.mxu0 0
  %511 = vmatpush2.bf16.msra.mxu0 0
  %512 = vmatprep.subr.bf16.mxu0 0
  %513 = vmatpush2.bf16.msra.mxu0 0
  %514 = vmatprep.subr.bf16.mxu0 0
  %515 = vmatpush2.bf16.msra.mxu0 0
  %516 = vmatprep.subr.bf16.mxu0 0
  %517 = vmatpush2.bf16.msra.mxu0 0
  %518 = vmatprep.subr.bf16.mxu0 0
  %519 = vmatpush2.bf16.msra.mxu0 0
  %520 = vmatprep.subr.bf16.mxu0 0
  %521 = vmatpush2.bf16.msra.mxu0 0
  %522 = vmatprep.subr.bf16.mxu0 0
  %523 = vmatpush2.bf16.msra.mxu0 0
  %524 = vmatprep.mubr.bf16.mxu0 0
  %525 = vmatmul.mubr.bf16.gmra.mxu0 %v420
  %v526 = vpop.f32.mrf.mxu0
  %v527 = vadd.f32 %v442, %v526
  %v528 = vpop.f32.mrf.mxu0
  %v529 = vpop.f32.mrf.mxu0
  %v530 = vpop.f32.mrf.mxu0
  %531 = vdwg.mxu0
  %v532 = vld [vmem:[%s10] sm:$0x1]
  %v533 = vld [vmem:[%s11] sm:$0x1]
  %534 = vadd.xlane.f32.xlu0 %v527
  %v535 = vpop.xlane.xlu0 %534
  %v536 = vmul.f32 %v535, 0.0078125
  %v537 = vmul.f32 %v527, %v527
  %538 = vadd.xlane.f32.xlu0 %v537
  %v539 = vpop.xlane.xlu0 %538
  %v540 = vmul.f32 %v539, 0.0078125
  %v541 = vmul.f32 %v536, %v536
  %v542 = vsub.f32 %v540, %v541
  %v543 = vmax.f32 %v542, 0.0
  %v544 = vsub.f32 %v527, %v536
  %v545 = vadd.f32 %v543, 1e-05
  %v546 = vrsqrt.pop %v545
  %v547 = vmul.f32 %v544, %v546
  %v549 = vlaneseq
  %v550 = vshrl.u32 %v549, 7
  %v551 = vsub.s32 0, %v550
  %v552 = vrot.slane %v532, %v551
  %v554 = vmul.f32 %v547, %v552
  %v556 = vlaneseq
  %v557 = vshrl.u32 %v556, 7
  %v558 = vsub.s32 0, %v557
  %v559 = vrot.slane %v533, %v558
  %v561 = vadd.f32 %v554, %v559
  %v562 = vmax.f32 %v561, 0.0
  %v563 = vadd.f32 %v562, %v419
  %v564 = vmax.f32 %v563, 0.0
  %v565 = vpack.c.bf16 %v564, %v564
  %v566 = vld [vmem:[%s12] sm:$0xf]
  %v567 = vld [vmem:[%s12 + $0x4] sm:$0xf]
  %v568 = vld [vmem:[%s12 + $0x8] sm:$0xf]
  %v569 = vld [vmem:[%s12 + $0xc] sm:$0xf]
  %v570 = vld [vmem:[%s12 + $0x10] sm:$0xf]
  %v571 = vld [vmem:[%s12 + $0x14] sm:$0xf]
  %v572 = vld [vmem:[%s12 + $0x18] sm:$0xf]
  %v573 = vld [vmem:[%s12 + $0x1c] sm:$0xf]
  %v574 = vld [vmem:[%s12 + $0x20] sm:$0xf]
  %v575 = vld [vmem:[%s12 + $0x24] sm:$0xf]
  %v576 = vld [vmem:[%s12 + $0x28] sm:$0xf]
  %v577 = vld [vmem:[%s12 + $0x2c] sm:$0xf]
  %v578 = vld [vmem:[%s12 + $0x30] sm:$0xf]
  %v579 = vld [vmem:[%s12 + $0x34] sm:$0xf]
  %v580 = vld [vmem:[%s12 + $0x38] sm:$0xf]
  %v581 = vld [vmem:[%s12 + $0x3c] sm:$0xf]
  %v582 = vld [vmem:[%s13] sm:$0x1]
  %v584 = vlaneseq
  %v585 = vshrl.u32 %v584, 7
  %v586 = vsub.s32 0, %v585
  %v587 = vrot.slane %v582, %v586
  %v605 = vunpack.c.l.b16 %v566
  %v606 = vunpack.c.l.b16 %v567
  %v607 = vunpack.c.l.b16 %v568
  %v608 = vunpack.c.l.b16 %v569
  %v609 = vunpack.c.l.b16 %v570
  %v610 = vunpack.c.l.b16 %v571
  %v611 = vunpack.c.l.b16 %v572
  %v612 = vunpack.c.l.b16 %v573
  %v613 = vunpack.c.l.b16 %v574
  %v614 = vunpack.c.l.b16 %v575
  %v615 = vunpack.c.l.b16 %v576
  %v616 = vunpack.c.l.b16 %v577
  %v617 = vunpack.c.l.b16 %v578
  %v618 = vunpack.c.l.b16 %v579
  %v619 = vunpack.c.l.b16 %v580
  %v620 = vunpack.c.l.b16 %v581
  %v621 = vpack.c.b16 %v606, %v605
  %v622 = vpack.c.b16 %v608, %v607
  %v623 = vpack.c.b16 %v610, %v609
  %v624 = vpack.c.b16 %v612, %v611
  %v625 = vpack.c.b16 %v614, %v613
  %v626 = vpack.c.b16 %v616, %v615
  %v627 = vpack.c.b16 %v618, %v617
  %v628 = vpack.c.b16 %v620, %v619
  %637 = vmatprep.subr.bf16.mxu0 0
  %638 = vmatpush1.bf16.msra.mxu0 %v628
  %639 = vmatprep.subr.bf16.mxu0 0
  %640 = vmatpush1.bf16.msra.mxu0 %v627
  %641 = vmatprep.subr.bf16.mxu0 0
  %642 = vmatpush1.bf16.msra.mxu0 %v626
  %643 = vmatprep.subr.bf16.mxu0 0
  %644 = vmatpush1.bf16.msra.mxu0 %v625
  %645 = vmatprep.subr.bf16.mxu0 0
  %646 = vmatpush1.bf16.msra.mxu0 %v624
  %647 = vmatprep.subr.bf16.mxu0 0
  %648 = vmatpush1.bf16.msra.mxu0 %v623
  %649 = vmatprep.subr.bf16.mxu0 0
  %650 = vmatpush1.bf16.msra.mxu0 %v622
  %651 = vmatprep.subr.bf16.mxu0 0
  %652 = vmatpush1.bf16.msra.mxu0 %v621
  %653 = vmatprep.subr.bf16.mxu0 0
  %654 = vmatpush2.bf16.msra.mxu0 0
  %655 = vmatprep.subr.bf16.mxu0 0
  %656 = vmatpush2.bf16.msra.mxu0 0
  %657 = vmatprep.subr.bf16.mxu0 0
  %658 = vmatpush2.bf16.msra.mxu0 0
  %659 = vmatprep.subr.bf16.mxu0 0
  %660 = vmatpush2.bf16.msra.mxu0 0
  %661 = vmatprep.subr.bf16.mxu0 0
  %662 = vmatpush2.bf16.msra.mxu0 0
  %663 = vmatprep.subr.bf16.mxu0 0
  %664 = vmatpush2.bf16.msra.mxu0 0
  %665 = vmatprep.subr.bf16.mxu0 0
  %666 = vmatpush2.bf16.msra.mxu0 0
  %667 = vmatprep.subr.bf16.mxu0 0
  %668 = vmatpush2.bf16.msra.mxu0 0
  %669 = vmatprep.mubr.bf16.mxu0 0
  %670 = vmatmul.mubr.bf16.gmra.mxu0 %v565
  %v671 = vpop.f32.mrf.mxu0
  %v672 = vadd.f32 %v587, %v671
  %v673 = vpop.f32.mrf.mxu0
  %v674 = vpop.f32.mrf.mxu0
  %v675 = vpop.f32.mrf.mxu0
  %676 = vdwg.mxu0
  %677 = vst [vmem:[%s14] sm:$0xff] %v672
  // Predicated region
  $region58: #{forward.3} parent=0 // pred_check
    _
  $region59: #{forward.3} parent=0 // pred_check_branch
    %679 = sbr.rel (0) target = $region61
  $region60: #{forward.3} parent=0 // pred_region
    _
  $region61: #{forward.3} parent=0 // pred_fallthru
    _
  // Predicated region
  $region62: #{forward.3} parent=0 // pred_check
    _
  $region63: #{forward.3} parent=0 // pred_check_branch
    %681 = sbr.rel (0) target = $region65
  $region64: #{forward.3} parent=0 // pred_region
    _
  $region65: #{forward.3} parent=0 // pred_fallthru
    _

</llo_original>
